<compile_context>
chip_gen: v7x
topology: tpu7x:2x2x1
jax: 0.10.0
libtpu: 0.0.40
codegen_flags: <defaults>
</compile_context>

<pallas_src>
import math

import jax
import jax.numpy as jnp
from jax.experimental import pallas as pl
from jax.experimental.pallas import tpu as pltpu

LN_EPS = 1e-5
HALO = 16   # top halo rows; 16 keeps the bf16 (16,128)-tiled interior store aligned


def _subnet_kernel(x_ref, band1_ref, b1_ref, asum_ref, aexp_ref, gamma_ref,
                   beta_ref, band2_ref, b2_ref, o_ref, pad_ref):
    # x_ref:     (1, H, L)        bf16  P lane-packed images, channel-packed rows
    # band1_ref: (3, L, L)        bf16  block-diag banded conv1 weights (per vertical tap)
    # b1_ref:    (1, L)           f32   conv1 bias tiled over (p, w)
    # asum_ref:  (L, P*W)         bf16  block-diag group-sum reduce matrix (exact 0/1)
    # aexp_ref:  (P*W, L)         bf16  block-diag group broadcast matrix (exact 0/1)
    # gamma_ref: (1, L)           f32   LN gamma tiled over (p, w)
    # beta_ref:  (1, L)           f32   LN beta tiled over (p, w)
    # band2_ref: (3, L, Lout)     bf16  block-diag banded conv2 weights
    # b2_ref:    (1, Lout)        f32   conv2 bias tiled over (p, w)
    # o_ref:     (1, H, Lout)     f32   lane-dense output block
    # pad_ref:   (HALO+H+HALO, L) bf16  scratch; image interior at rows [HALO:HALO+H]
    H = x_ref.shape[1]
    lanes = pad_ref.shape[1]
    cmid = asum_ref.shape[0] // asum_ref.shape[1]   # channels per lane group (static)

    # Zero only the vertical halo rows that are read, as 2-row stores at even
    # offsets (bf16 rows pack in sublane pairs -> no read-modify-write).
    # Per-step zeroing stays correct however the parallel axis is split.
    zrows = jnp.zeros((2, lanes), pad_ref.dtype)
    pad_ref[HALO - 2:HALO, :] = zrows
    pad_ref[HALO + H:HALO + H + 2, :] = zrows

    def conv3x3(band_ref):
        # One dot per vertical tap; horizontal taps + horizontal zero padding
        # are folded into the block-banded matrices (K = lanes).
        acc = jnp.dot(pad_ref[HALO - 1:HALO - 1 + H, :], band_ref[0],
                      preferred_element_type=jnp.float32)
        acc += jnp.dot(pad_ref[HALO:HALO + H, :], band_ref[1],
                       preferred_element_type=jnp.float32)
        acc += jnp.dot(pad_ref[HALO + 1:HALO + 1 + H, :], band_ref[2],
                       preferred_element_type=jnp.float32)
        return acc

    # ---- conv1 (bf16 operands, f32 accumulate) ----
    pad_ref[HALO:HALO + H, :] = x_ref[0]               # tile-aligned interior store
    y = conv3x3(band1_ref) + b1_ref[...]               # (H, L) f32

    # ---- LayerNorm over each cmid-channel lane group + ReLU (f32 stats) ----
    def _split(v):
        hi = v.astype(jnp.bfloat16)
        lo = (v - hi.astype(jnp.float32)).astype(jnp.bfloat16)
        return hi, lo

    def _group_sum(v):          # (H, L) f32 -> (H, P*W) f32, f32-accurate
        hi, lo = _split(v)
        return (jnp.dot(hi, asum_ref[...], preferred_element_type=jnp.float32)
                + jnp.dot(lo, asum_ref[...], preferred_element_type=jnp.float32))

    def _group_bcast(v):        # (H, P*W) f32 -> (H, L) f32, f32-accurate
        hi, lo = _split(v)
        return (jnp.dot(hi, aexp_ref[...], preferred_element_type=jnp.float32)
                + jnp.dot(lo, aexp_ref[...], preferred_element_type=jnp.float32))

    inv_c = 1.0 / cmid
    mean = _group_sum(y) * inv_c          # the two reductions are independent,
    ey2 = _group_sum(y * y) * inv_c       # shortening the serial MXU chain
    var = jnp.maximum(ey2 - mean * mean, 0.0)
    scale = jax.lax.rsqrt(var + LN_EPS)   # EUP
    act = (y - _group_bcast(mean)) * _group_bcast(scale) * gamma_ref[...] + beta_ref[...]
    act = jnp.maximum(act, 0.0)

    # ---- conv2 (reuse the same halo scratch; Cin == Cmid) ----
    pad_ref[HALO:HALO + H, :] = act.astype(pad_ref.dtype)
    o_ref[0] = (conv3x3(band2_ref) + b2_ref[...]).astype(o_ref.dtype)


def _band_matrices(w_hwio, width, pack):
    """Fold the 3 horizontal taps (and horizontal zero padding) of a 3x3 conv
    into three block-banded matrices of shape (pack*W*cin, pack*W*cout), one
    per vertical tap kh; block-diagonal over `pack` so lane-packed images
    never mix:  band_kh[wi*cin+ci, w*cout+co] = w[kh, wi-w+1, ci, co]."""
    _, _, cin, cout = w_hwio.shape
    bands = []
    for kh in range(3):
        m = jnp.zeros((width * cin, width * cout), jnp.float32)
        for kw in range(3):
            # output column w reads input column w + (kw - 1)
            m = m + jnp.kron(jnp.eye(width, k=1 - kw, dtype=jnp.float32),
                             w_hwio[kh, kw].astype(jnp.float32))
        bands.append(jnp.kron(jnp.eye(pack, dtype=jnp.float32), m))
    return jnp.stack(bands)


def _pack_factor(batch, width, cin, max_lanes=512):
    """Smallest P dividing `batch` such that P*W*Cin is a multiple of 128
    (full-lane vregs / unmasked stores) without exceeding max_lanes."""
    for p in range(1, batch + 1):
        if batch % p:
            continue
        lanes = p * width * cin
        if lanes > max_lanes:
            break
        if lanes % 128 == 0:
            return p
    return 1


def pack_operands(params, width, pack):
    """Pre-pack weights / LN matrices for the lane-packed kernel (once per layer)."""
    w1, b1, gamma, beta, w2, b2 = params
    cmid = w1.shape[-1]
    band1 = _band_matrices(w1, width, pack).astype(jnp.bfloat16)
    band2 = _band_matrices(w2, width, pack).astype(jnp.bfloat16)
    rep = pack * width
    b1p = jnp.tile(b1.astype(jnp.float32), rep).reshape(1, -1)
    b2p = jnp.tile(b2.astype(jnp.float32), rep).reshape(1, -1)
    gammap = jnp.tile(gamma.astype(jnp.float32), rep).reshape(1, -1)
    betap = jnp.tile(beta.astype(jnp.float32), rep).reshape(1, -1)
    eye_pw = jnp.eye(rep, dtype=jnp.float32)
    asum = jnp.kron(eye_pw, jnp.ones((cmid, 1), jnp.float32)).astype(jnp.bfloat16)
    aexp = jnp.kron(eye_pw, jnp.ones((1, cmid), jnp.float32)).astype(jnp.bfloat16)
    return (band1, b1p, asum, aexp, gammap, betap, band2, b2p)


def subnet_conv_ln_pallas_packed(x_packed, operands):
    """Packed-layout forward: (G, H, P*W*Cin) bf16 -> (G, H, P*W*Cout) f32.
    Exposed so consecutive flow-model blocks can stay in this layout."""
    band1, b1p, asum, aexp, gammap, betap, band2, b2p = operands
    G, H, lanes_in = x_packed.shape
    lanes_mid = band1.shape[-1]
    lanes_out = band2.shape[-1]
    assert lanes_in == lanes_mid, "dim_mid == dim_in (halo scratch is reused)"

    return pl.pallas_call(
        _subnet_kernel,
        out_shape=jax.ShapeDtypeStruct((G, H, lanes_out), jnp.float32),
        grid_spec=pltpu.PrefetchScalarGridSpec(
            num_scalar_prefetch=0,
            grid=(G,),
            in_specs=[
                pl.BlockSpec((1, H, lanes_in), lambda g: (g, 0, 0)),
                pl.BlockSpec(band1.shape, lambda g: (0, 0, 0)),
                pl.BlockSpec(b1p.shape, lambda g: (0, 0)),
                pl.BlockSpec(asum.shape, lambda g: (0, 0)),
                pl.BlockSpec(aexp.shape, lambda g: (0, 0)),
                pl.BlockSpec(gammap.shape, lambda g: (0, 0)),
                pl.BlockSpec(betap.shape, lambda g: (0, 0)),
                pl.BlockSpec(band2.shape, lambda g: (0, 0, 0)),
                pl.BlockSpec(b2p.shape, lambda g: (0, 0)),
            ],
            out_specs=pl.BlockSpec((1, H, lanes_out), lambda g: (g, 0, 0)),
            scratch_shapes=[
                pltpu.VMEM((HALO + H + HALO, lanes_mid), jnp.bfloat16),
            ],
        ),
        compiler_params=pltpu.CompilerParams(
            dimension_semantics=("parallel",),
            # Footprint is tiny here; any future H-tiling for large images
            # should be sized against v7x's 64 MiB physical VMEM, not 128 MiB.
            vmem_limit_bytes=32 * 1024 * 1024),
    )(x_packed, band1, b1p, asum, aexp, gammap, betap, band2, b2p)


def subnet_conv_ln_pallas(x_nchw, params, pack=None):
    """Forward pass with the PyTorch interface: (B, Cin, H, W) f32 -> (B, Cout, H, W) f32."""
    # TODO(synk): in the full flow model, keep activations in the packed
    # (G, H, P*W*C) layout across consecutive subnet blocks (call
    # subnet_conv_ln_pallas_packed directly) so the NCHW<->packed relayouts and
    # the bf16 cast below are not paid per block.
    w1, _, _, _, w2, _ = params
    B, Cin, H, W = x_nchw.shape
    Cmid = w1.shape[-1]
    Cout = w2.shape[-1]
    assert Cin == Cmid, "subnet_conv_ln has dim_mid == dim_in"

    if pack is None:
        pack = _pack_factor(B, W, Cin)
    assert B % pack == 0
    G = B // pack

    # NCHW -> lane-packed (G, H, pack*W*Cin) bf16 rows.
    x = jnp.transpose(x_nchw, (0, 2, 3, 1))                       # (B,H,W,Cin)
    x = x.reshape(G, pack, H, W, Cin)
    x = jnp.transpose(x, (0, 2, 1, 3, 4)).reshape(G, H, pack * W * Cin)
    x = x.astype(jnp.bfloat16)

    operands = pack_operands(params, W, pack)
    out = subnet_conv_ln_pallas_packed(x, operands)               # (G,H,pack*W*Cout) f32

    out = out.reshape(G, H, pack, W, Cout)
    out = jnp.transpose(out, (0, 2, 4, 1, 3)).reshape(B, Cout, H, W)
    return out


def subnet_conv_ln_reference(x_nchw, params, matmul_dtype=jnp.float32):
    """Pure-JAX reference (mirrors the PyTorch forward).  matmul_dtype=bf16
    applies the same mixed-precision policy as the Pallas kernel (bf16 conv
    operands, f32 accumulation, f32 LayerNorm/bias/ReLU)."""
    w1, b1, gamma, beta, w2, b2 = params
    dn = ('NHWC', 'HWIO', 'NHWC')

    def conv(u, w):
        return jax.lax.conv_general_dilated(
            u.astype(matmul_dtype), w.astype(matmul_dtype), (1, 1), 'SAME',
            dimension_numbers=dn, preferred_element_type=jnp.float32)

    x = jnp.transpose(x_nchw, (0, 2, 3, 1))
    y = conv(x, w1) + b1
    mean = y.mean(-1, keepdims=True)
    var = ((y - mean) ** 2).mean(-1, keepdims=True)
    y = (y - mean) * jax.lax.rsqrt(var + LN_EPS) * gamma + beta
    y = jnp.maximum(y, 0.0)
    y = conv(y, w2) + b2
    return jnp.transpose(y, (0, 3, 1, 2))


def init_params(key, dim_in, dim_out):
    dim_mid = dim_in
    k1, k2, k3, k4, k5, k6 = jax.random.split(key, 6)
    s1 = 1.0 / math.sqrt(9 * dim_in)
    s2 = 1.0 / math.sqrt(9 * dim_mid)
    w1 = jax.random.normal(k1, (3, 3, dim_in, dim_mid), jnp.float32) * s1
    b1 = jax.random.normal(k2, (dim_mid,), jnp.float32) * 0.1
    gamma = 1.0 + 0.1 * jax.random.normal(k3, (dim_mid,), jnp.float32)
    beta = 0.1 * jax.random.normal(k4, (dim_mid,), jnp.float32)
    w2 = jax.random.normal(k5, (3, 3, dim_mid, dim_out), jnp.float32) * s2
    b2 = jax.random.normal(k6, (dim_out,), jnp.float32) * 0.1
    return (w1, b1, gamma, beta, w2, b2)


if __name__ == "__main__":
    B, dim_in, dim_out, H, W = 2, 4, 8, 16, 16
    key = jax.random.PRNGKey(0)
    kx, kp = jax.random.split(key)
    x = jax.random.normal(kx, (B, dim_in, H, W), jnp.float32)
    params = init_params(kp, dim_in, dim_out)

    out = jax.block_until_ready(subnet_conv_ln_pallas(x, params))
    assert out.shape == (B, dim_out, H, W), out.shape

    # Tight gate vs. a reference that applies the same bf16-conv-operand /
    # f32-accumulate / f32-LayerNorm policy as the kernel.
    ref_mixed = jax.block_until_ready(
        subnet_conv_ln_reference(x, params, matmul_dtype=jnp.bfloat16))
    if not jnp.allclose(out, ref_mixed, rtol=1e-2, atol=1e-2):
        max_err = float(jnp.max(jnp.abs(out - ref_mixed)))
        raise AssertionError(
            f"mismatch vs bf16-matched reference, max abs err = {max_err}")

    # Loose sanity check vs. the pure-f32 reference: bf16 conv1 operands plus
    # LayerNorm over only 4 channels amplify rounding at low-variance pixels;
    # this is a documented precision limit of the bf16 conv policy, not of the
    # (f32-accurate) LayerNorm statistics in the kernel.
    ref_f32 = jax.block_until_ready(subnet_conv_ln_reference(x, params))
    if not jnp.allclose(out, ref_f32, rtol=1e-1, atol=1e-1):
        max_err = float(jnp.max(jnp.abs(out - ref_f32)))
        raise AssertionError(
            f"mismatch vs f32 reference, max abs err = {max_err}")

    print("KERNEL_OK")
</pallas_src>

<mosaic_0001>
module attributes {stable_mosaic.version = 11 : i64} {
  func.func @_subnet_kernel(%arg0: i32, %arg1: memref<1x16x128xbf16, #tpu.memory_space<vmem>>, %arg2: memref<3x128x128xbf16, #tpu.memory_space<vmem>>, %arg3: memref<1x128xf32, #tpu.memory_space<vmem>>, %arg4: memref<128x32xbf16, #tpu.memory_space<vmem>>, %arg5: memref<32x128xbf16, #tpu.memory_space<vmem>>, %arg6: memref<1x128xf32, #tpu.memory_space<vmem>>, %arg7: memref<1x128xf32, #tpu.memory_space<vmem>>, %arg8: memref<3x128x256xbf16, #tpu.memory_space<vmem>>, %arg9: memref<1x256xf32, #tpu.memory_space<vmem>>, %arg10: memref<1x16x256xf32, #tpu.memory_space<vmem>>, %arg11: memref<48x128xbf16, #tpu.memory_space<vmem>>) attributes {dimension_semantics = [#tpu.dimension_semantics<parallel>], iteration_bounds = array<i64: 1>, scalar_prefetch = 0 : i64, scratch_operands = 1 : i64, tpu.core_type = #tpu.core_type<tc>, window_params = [{transform_indices = @transform_0, window_bounds = array<i64: 1, 16, 128>}, {pipeline_mode = #tpu.pipeline_mode<synchronous>, transform_indices = @transform_1, window_bounds = array<i64: 3, 128, 128>}, {pipeline_mode = #tpu.pipeline_mode<synchronous>, transform_indices = @transform_2, window_bounds = array<i64: 1, 128>}, {pipeline_mode = #tpu.pipeline_mode<synchronous>, transform_indices = @transform_3, window_bounds = array<i64: 128, 32>}, {pipeline_mode = #tpu.pipeline_mode<synchronous>, transform_indices = @transform_4, window_bounds = array<i64: 32, 128>}, {pipeline_mode = #tpu.pipeline_mode<synchronous>, transform_indices = @transform_5, window_bounds = array<i64: 1, 128>}, {pipeline_mode = #tpu.pipeline_mode<synchronous>, transform_indices = @transform_6, window_bounds = array<i64: 1, 128>}, {pipeline_mode = #tpu.pipeline_mode<synchronous>, transform_indices = @transform_7, window_bounds = array<i64: 3, 128, 256>}, {pipeline_mode = #tpu.pipeline_mode<synchronous>, transform_indices = @transform_8, window_bounds = array<i64: 1, 256>}, {transform_indices = @transform_9, window_bounds = array<i64: 1, 16, 256>}]} {
    %cst = arith.constant 0.000000e+00 : bf16
    %0 = vector.broadcast %cst : bf16 to vector<2x128xbf16>
    %c14 = arith.constant 14 : index
    %c0 = arith.constant 0 : index
    %1 = vector.load %arg11[%c14, %c0] : memref<48x128xbf16, #tpu.memory_space<vmem>>, vector<2x128xbf16>
    tpu.vector_store %arg11[%c14, %c0], %0 {strides = array<i32>} : memref<48x128xbf16, #tpu.memory_space<vmem>>, vector<2x128xbf16>,
    %c32 = arith.constant 32 : index
    %c0_0 = arith.constant 0 : index
    %2 = vector.load %arg11[%c32, %c0_0] : memref<48x128xbf16, #tpu.memory_space<vmem>>, vector<2x128xbf16>
    tpu.vector_store %arg11[%c32, %c0_0], %0 {strides = array<i32>} : memref<48x128xbf16, #tpu.memory_space<vmem>>, vector<2x128xbf16>,
    %c0_1 = arith.constant 0 : index
    %c0_2 = arith.constant 0 : index
    %c0_3 = arith.constant 0 : index
    %3 = vector.load %arg1[%c0_1, %c0_2, %c0_3] : memref<1x16x128xbf16, #tpu.memory_space<vmem>>, vector<1x16x128xbf16>
    %4 = vector.shape_cast %3 : vector<1x16x128xbf16> to vector<16x128xbf16>
    %c16 = arith.constant 16 : index
    %c0_4 = arith.constant 0 : index
    %5 = vector.load %arg11[%c16, %c0_4] : memref<48x128xbf16, #tpu.memory_space<vmem>>, vector<16x128xbf16>
    tpu.vector_store %arg11[%c16, %c0_4], %4 {strides = array<i32>} : memref<48x128xbf16, #tpu.memory_space<vmem>>, vector<16x128xbf16>,
    %c15 = arith.constant 15 : index
    %c0_5 = arith.constant 0 : index
    %6 = vector.load %arg11[%c15, %c0_5] : memref<48x128xbf16, #tpu.memory_space<vmem>>, vector<16x128xbf16>
    %c0_6 = arith.constant 0 : index
    %c0_7 = arith.constant 0 : index
    %c0_8 = arith.constant 0 : index
    %7 = vector.load %arg2[%c0_6, %c0_7, %c0_8] : memref<3x128x128xbf16, #tpu.memory_space<vmem>>, vector<1x128x128xbf16>
    %8 = vector.shape_cast %7 : vector<1x128x128xbf16> to vector<128x128xbf16>
    %cst_9 = arith.constant dense<0.000000e+00> : vector<16x128xf32>
    %9 = tpu.matmul %6, %8, %cst_9 {dimension_numbers = #tpu.dot_dimension_numbers<[1], [0], [0], [1], [0, 0, 1, 1], [], []>} : vector<16x128xbf16>, vector<128x128xbf16>, vector<16x128xf32> -> vector<16x128xf32>
    %c16_10 = arith.constant 16 : index
    %c0_11 = arith.constant 0 : index
    %10 = vector.load %arg11[%c16_10, %c0_11] : memref<48x128xbf16, #tpu.memory_space<vmem>>, vector<16x128xbf16>
    %c1 = arith.constant 1 : index
    %c0_12 = arith.constant 0 : index
    %c0_13 = arith.constant 0 : index
    %11 = vector.load %arg2[%c1, %c0_12, %c0_13] : memref<3x128x128xbf16, #tpu.memory_space<vmem>>, vector<1x128x128xbf16>
    %12 = vector.shape_cast %11 : vector<1x128x128xbf16> to vector<128x128xbf16>
    %cst_14 = arith.constant dense<0.000000e+00> : vector<16x128xf32>
    %13 = tpu.matmul %10, %12, %cst_14 {dimension_numbers = #tpu.dot_dimension_numbers<[1], [0], [0], [1], [0, 0, 1, 1], [], []>} : vector<16x128xbf16>, vector<128x128xbf16>, vector<16x128xf32> -> vector<16x128xf32>
    %14 = arith.addf %9, %13 : vector<16x128xf32>
    %c17 = arith.constant 17 : index
    %c0_15 = arith.constant 0 : index
    %15 = vector.load %arg11[%c17, %c0_15] : memref<48x128xbf16, #tpu.memory_space<vmem>>, vector<16x128xbf16>
    %c2 = arith.constant 2 : index
    %c0_16 = arith.constant 0 : index
    %c0_17 = arith.constant 0 : index
    %16 = vector.load %arg2[%c2, %c0_16, %c0_17] : memref<3x128x128xbf16, #tpu.memory_space<vmem>>, vector<1x128x128xbf16>
    %17 = vector.shape_cast %16 : vector<1x128x128xbf16> to vector<128x128xbf16>
    %cst_18 = arith.constant dense<0.000000e+00> : vector<16x128xf32>
    %18 = tpu.matmul %15, %17, %cst_18 {dimension_numbers = #tpu.dot_dimension_numbers<[1], [0], [0], [1], [0, 0, 1, 1], [], []>} : vector<16x128xbf16>, vector<128x128xbf16>, vector<16x128xf32> -> vector<16x128xf32>
    %19 = arith.addf %14, %18 : vector<16x128xf32>
    %c0_19 = arith.constant 0 : index
    %c0_20 = arith.constant 0 : index
    %20 = vector.load %arg3[%c0_19, %c0_20] : memref<1x128xf32, #tpu.memory_space<vmem>>, vector<1x128xf32>
    %21 = vector.broadcast %20 : vector<1x128xf32> to vector<16x128xf32>
    %22 = arith.addf %19, %21 : vector<16x128xf32>
    %23 = arith.truncf %22 : vector<16x128xf32> to vector<16x128xbf16>
    %24 = arith.extf %23 : vector<16x128xbf16> to vector<16x128xf32>
    %25 = arith.subf %22, %24 : vector<16x128xf32>
    %26 = arith.truncf %25 : vector<16x128xf32> to vector<16x128xbf16>
    %c0_21 = arith.constant 0 : index
    %c0_22 = arith.constant 0 : index
    %27 = vector.load %arg4[%c0_21, %c0_22] : memref<128x32xbf16, #tpu.memory_space<vmem>>, vector<128x32xbf16>
    %cst_23 = arith.constant dense<0.000000e+00> : vector<16x32xf32>
    %28 = tpu.matmul %23, %27, %cst_23 {dimension_numbers = #tpu.dot_dimension_numbers<[1], [0], [0], [1], [0, 0, 1, 1], [], []>} : vector<16x128xbf16>, vector<128x32xbf16>, vector<16x32xf32> -> vector<16x32xf32>
    %c0_24 = arith.constant 0 : index
    %c0_25 = arith.constant 0 : index
    %29 = vector.load %arg4[%c0_24, %c0_25] : memref<128x32xbf16, #tpu.memory_space<vmem>>, vector<128x32xbf16>
    %cst_26 = arith.constant dense<0.000000e+00> : vector<16x32xf32>
    %30 = tpu.matmul %26, %29, %cst_26 {dimension_numbers = #tpu.dot_dimension_numbers<[1], [0], [0], [1], [0, 0, 1, 1], [], []>} : vector<16x128xbf16>, vector<128x32xbf16>, vector<16x32xf32> -> vector<16x32xf32>
    %31 = arith.addf %28, %30 : vector<16x32xf32>
    %cst_27 = arith.constant 2.500000e-01 : f32
    %32 = vector.broadcast %cst_27 : f32 to vector<16x32xf32>
    %33 = arith.mulf %31, %32 : vector<16x32xf32>
    %34 = arith.mulf %22, %22 : vector<16x128xf32>
    %35 = arith.truncf %34 : vector<16x128xf32> to vector<16x128xbf16>
    %36 = arith.extf %35 : vector<16x128xbf16> to vector<16x128xf32>
    %37 = arith.subf %34, %36 : vector<16x128xf32>
    %38 = arith.truncf %37 : vector<16x128xf32> to vector<16x128xbf16>
    %c0_28 = arith.constant 0 : index
    %c0_29 = arith.constant 0 : index
    %39 = vector.load %arg4[%c0_28, %c0_29] : memref<128x32xbf16, #tpu.memory_space<vmem>>, vector<128x32xbf16>
    %cst_30 = arith.constant dense<0.000000e+00> : vector<16x32xf32>
    %40 = tpu.matmul %35, %39, %cst_30 {dimension_numbers = #tpu.dot_dimension_numbers<[1], [0], [0], [1], [0, 0, 1, 1], [], []>} : vector<16x128xbf16>, vector<128x32xbf16>, vector<16x32xf32> -> vector<16x32xf32>
    %c0_31 = arith.constant 0 : index
    %c0_32 = arith.constant 0 : index
    %41 = vector.load %arg4[%c0_31, %c0_32] : memref<128x32xbf16, #tpu.memory_space<vmem>>, vector<128x32xbf16>
    %cst_33 = arith.constant dense<0.000000e+00> : vector<16x32xf32>
    %42 = tpu.matmul %38, %41, %cst_33 {dimension_numbers = #tpu.dot_dimension_numbers<[1], [0], [0], [1], [0, 0, 1, 1], [], []>} : vector<16x128xbf16>, vector<128x32xbf16>, vector<16x32xf32> -> vector<16x32xf32>
    %43 = arith.addf %40, %42 : vector<16x32xf32>
    %cst_34 = arith.constant 2.500000e-01 : f32
    %44 = vector.broadcast %cst_34 : f32 to vector<16x32xf32>
    %45 = arith.mulf %43, %44 : vector<16x32xf32>
    %46 = arith.mulf %33, %33 : vector<16x32xf32>
    %47 = arith.subf %45, %46 : vector<16x32xf32>
    %cst_35 = arith.constant 0.000000e+00 : f32
    %48 = vector.broadcast %cst_35 : f32 to vector<16x32xf32>
    %49 = arith.maximumf %47, %48 : vector<16x32xf32>
    %cst_36 = arith.constant 9.99999974E-6 : f32
    %50 = vector.broadcast %cst_36 : f32 to vector<16x32xf32>
    %51 = arith.addf %49, %50 : vector<16x32xf32>
    %52 = math.rsqrt %51 : vector<16x32xf32>
    %53 = arith.truncf %33 : vector<16x32xf32> to vector<16x32xbf16>
    %54 = arith.extf %53 : vector<16x32xbf16> to vector<16x32xf32>
    %55 = arith.subf %33, %54 : vector<16x32xf32>
    %56 = arith.truncf %55 : vector<16x32xf32> to vector<16x32xbf16>
    %c0_37 = arith.constant 0 : index
    %c0_38 = arith.constant 0 : index
    %57 = vector.load %arg5[%c0_37, %c0_38] : memref<32x128xbf16, #tpu.memory_space<vmem>>, vector<32x128xbf16>
    %cst_39 = arith.constant dense<0.000000e+00> : vector<16x128xf32>
    %58 = tpu.matmul %53, %57, %cst_39 {dimension_numbers = #tpu.dot_dimension_numbers<[1], [0], [0], [1], [0, 0, 1, 1], [], []>} : vector<16x32xbf16>, vector<32x128xbf16>, vector<16x128xf32> -> vector<16x128xf32>
    %c0_40 = arith.constant 0 : index
    %c0_41 = arith.constant 0 : index
    %59 = vector.load %arg5[%c0_40, %c0_41] : memref<32x128xbf16, #tpu.memory_space<vmem>>, vector<32x128xbf16>
    %cst_42 = arith.constant dense<0.000000e+00> : vector<16x128xf32>
    %60 = tpu.matmul %56, %59, %cst_42 {dimension_numbers = #tpu.dot_dimension_numbers<[1], [0], [0], [1], [0, 0, 1, 1], [], []>} : vector<16x32xbf16>, vector<32x128xbf16>, vector<16x128xf32> -> vector<16x128xf32>
    %61 = arith.addf %58, %60 : vector<16x128xf32>
    %62 = arith.subf %22, %61 : vector<16x128xf32>
    %63 = arith.truncf %52 : vector<16x32xf32> to vector<16x32xbf16>
    %64 = arith.extf %63 : vector<16x32xbf16> to vector<16x32xf32>
    %65 = arith.subf %52, %64 : vector<16x32xf32>
    %66 = arith.truncf %65 : vector<16x32xf32> to vector<16x32xbf16>
    %c0_43 = arith.constant 0 : index
    %c0_44 = arith.constant 0 : index
    %67 = vector.load %arg5[%c0_43, %c0_44] : memref<32x128xbf16, #tpu.memory_space<vmem>>, vector<32x128xbf16>
    %cst_45 = arith.constant dense<0.000000e+00> : vector<16x128xf32>
    %68 = tpu.matmul %63, %67, %cst_45 {dimension_numbers = #tpu.dot_dimension_numbers<[1], [0], [0], [1], [0, 0, 1, 1], [], []>} : vector<16x32xbf16>, vector<32x128xbf16>, vector<16x128xf32> -> vector<16x128xf32>
    %c0_46 = arith.constant 0 : index
    %c0_47 = arith.constant 0 : index
    %69 = vector.load %arg5[%c0_46, %c0_47] : memref<32x128xbf16, #tpu.memory_space<vmem>>, vector<32x128xbf16>
    %cst_48 = arith.constant dense<0.000000e+00> : vector<16x128xf32>
    %70 = tpu.matmul %66, %69, %cst_48 {dimension_numbers = #tpu.dot_dimension_numbers<[1], [0], [0], [1], [0, 0, 1, 1], [], []>} : vector<16x32xbf16>, vector<32x128xbf16>, vector<16x128xf32> -> vector<16x128xf32>
    %71 = arith.addf %68, %70 : vector<16x128xf32>
    %72 = arith.mulf %62, %71 : vector<16x128xf32>
    %c0_49 = arith.constant 0 : index
    %c0_50 = arith.constant 0 : index
    %73 = vector.load %arg6[%c0_49, %c0_50] : memref<1x128xf32, #tpu.memory_space<vmem>>, vector<1x128xf32>
    %74 = vector.broadcast %73 : vector<1x128xf32> to vector<16x128xf32>
    %75 = arith.mulf %72, %74 : vector<16x128xf32>
    %c0_51 = arith.constant 0 : index
    %c0_52 = arith.constant 0 : index
    %76 = vector.load %arg7[%c0_51, %c0_52] : memref<1x128xf32, #tpu.memory_space<vmem>>, vector<1x128xf32>
    %77 = vector.broadcast %76 : vector<1x128xf32> to vector<16x128xf32>
    %78 = arith.addf %75, %77 : vector<16x128xf32>
    %cst_53 = arith.constant 0.000000e+00 : f32
    %79 = vector.broadcast %cst_53 : f32 to vector<16x128xf32>
    %80 = arith.maximumf %78, %79 : vector<16x128xf32>
    %81 = arith.truncf %80 : vector<16x128xf32> to vector<16x128xbf16>
    %c16_54 = arith.constant 16 : index
    %c0_55 = arith.constant 0 : index
    %82 = vector.load %arg11[%c16_54, %c0_55] : memref<48x128xbf16, #tpu.memory_space<vmem>>, vector<16x128xbf16>
    tpu.vector_store %arg11[%c16_54, %c0_55], %81 {strides = array<i32>} : memref<48x128xbf16, #tpu.memory_space<vmem>>, vector<16x128xbf16>,
    %c15_56 = arith.constant 15 : index
    %c0_57 = arith.constant 0 : index
    %83 = vector.load %arg11[%c15_56, %c0_57] : memref<48x128xbf16, #tpu.memory_space<vmem>>, vector<16x128xbf16>
    %c0_58 = arith.constant 0 : index
    %c0_59 = arith.constant 0 : index
    %c0_60 = arith.constant 0 : index
    %84 = vector.load %arg8[%c0_58, %c0_59, %c0_60] : memref<3x128x256xbf16, #tpu.memory_space<vmem>>, vector<1x128x256xbf16>
    %85 = vector.shape_cast %84 : vector<1x128x256xbf16> to vector<128x256xbf16>
    %cst_61 = arith.constant dense<0.000000e+00> : vector<16x256xf32>
    %86 = tpu.matmul %83, %85, %cst_61 {dimension_numbers = #tpu.dot_dimension_numbers<[1], [0], [0], [1], [0, 0, 1, 1], [], []>} : vector<16x128xbf16>, vector<128x256xbf16>, vector<16x256xf32> -> vector<16x256xf32>
    %c16_62 = arith.constant 16 : index
    %c0_63 = arith.constant 0 : index
    %87 = vector.load %arg11[%c16_62, %c0_63] : memref<48x128xbf16, #tpu.memory_space<vmem>>, vector<16x128xbf16>
    %c1_64 = arith.constant 1 : index
    %c0_65 = arith.constant 0 : index
    %c0_66 = arith.constant 0 : index
    %88 = vector.load %arg8[%c1_64, %c0_65, %c0_66] : memref<3x128x256xbf16, #tpu.memory_space<vmem>>, vector<1x128x256xbf16>
    %89 = vector.shape_cast %88 : vector<1x128x256xbf16> to vector<128x256xbf16>
    %cst_67 = arith.constant dense<0.000000e+00> : vector<16x256xf32>
    %90 = tpu.matmul %87, %89, %cst_67 {dimension_numbers = #tpu.dot_dimension_numbers<[1], [0], [0], [1], [0, 0, 1, 1], [], []>} : vector<16x128xbf16>, vector<128x256xbf16>, vector<16x256xf32> -> vector<16x256xf32>
    %91 = arith.addf %86, %90 : vector<16x256xf32>
    %c17_68 = arith.constant 17 : index
    %c0_69 = arith.constant 0 : index
    %92 = vector.load %arg11[%c17_68, %c0_69] : memref<48x128xbf16, #tpu.memory_space<vmem>>, vector<16x128xbf16>
    %c2_70 = arith.constant 2 : index
    %c0_71 = arith.constant 0 : index
    %c0_72 = arith.constant 0 : index
    %93 = vector.load %arg8[%c2_70, %c0_71, %c0_72] : memref<3x128x256xbf16, #tpu.memory_space<vmem>>, vector<1x128x256xbf16>
    %94 = vector.shape_cast %93 : vector<1x128x256xbf16> to vector<128x256xbf16>
    %cst_73 = arith.constant dense<0.000000e+00> : vector<16x256xf32>
    %95 = tpu.matmul %92, %94, %cst_73 {dimension_numbers = #tpu.dot_dimension_numbers<[1], [0], [0], [1], [0, 0, 1, 1], [], []>} : vector<16x128xbf16>, vector<128x256xbf16>, vector<16x256xf32> -> vector<16x256xf32>
    %96 = arith.addf %91, %95 : vector<16x256xf32>
    %c0_74 = arith.constant 0 : index
    %c0_75 = arith.constant 0 : index
    %97 = vector.load %arg9[%c0_74, %c0_75] : memref<1x256xf32, #tpu.memory_space<vmem>>, vector<1x256xf32>
    %98 = vector.broadcast %97 : vector<1x256xf32> to vector<16x256xf32>
    %99 = arith.addf %96, %98 : vector<16x256xf32>
    %c0_76 = arith.constant 0 : index
    %c0_77 = arith.constant 0 : index
    %c0_78 = arith.constant 0 : index
    %100 = vector.load %arg10[%c0_76, %c0_77, %c0_78] : memref<1x16x256xf32, #tpu.memory_space<vmem>>, vector<1x16x256xf32>
    %101 = vector.shape_cast %100 : vector<1x16x256xf32> to vector<16x256xf32>
    %102 = vector.shape_cast %99 : vector<16x256xf32> to vector<1x16x256xf32>
    tpu.vector_store %arg10[%c0_76, %c0_77, %c0_78], %102 {strides = array<i32>} : memref<1x16x256xf32, #tpu.memory_space<vmem>>, vector<1x16x256xf32>,
    return
  }
  func.func @transform_0(%arg0: i32) -> (i32, i32, i32) {
    %c0_i32 = arith.constant 0 : i32
    %c0_i32_0 = arith.constant 0 : i32
    %c0_i32_1 = arith.constant 0 : i32
    return %arg0, %c0_i32, %c0_i32_0 : i32, i32, i32
  }
  func.func @transform_1(%arg0: i32) -> (i32, i32, i32) {
    %c0_i32 = arith.constant 0 : i32
    %c0_i32_0 = arith.constant 0 : i32
    %c0_i32_1 = arith.constant 0 : i32
    %c0_i32_2 = arith.constant 0 : i32
    return %c0_i32, %c0_i32_0, %c0_i32_1 : i32, i32, i32
  }
  func.func @transform_2(%arg0: i32) -> (i32, i32) {
    %c0_i32 = arith.constant 0 : i32
    %c0_i32_0 = arith.constant 0 : i32
    %c0_i32_1 = arith.constant 0 : i32
    return %c0_i32, %c0_i32_0 : i32, i32
  }
  func.func @transform_3(%arg0: i32) -> (i32, i32) {
    %c0_i32 = arith.constant 0 : i32
    %c0_i32_0 = arith.constant 0 : i32
    %c0_i32_1 = arith.constant 0 : i32
    return %c0_i32, %c0_i32_0 : i32, i32
  }
  func.func @transform_4(%arg0: i32) -> (i32, i32) {
    %c0_i32 = arith.constant 0 : i32
    %c0_i32_0 = arith.constant 0 : i32
    %c0_i32_1 = arith.constant 0 : i32
    return %c0_i32, %c0_i32_0 : i32, i32
  }
  func.func @transform_5(%arg0: i32) -> (i32, i32) {
    %c0_i32 = arith.constant 0 : i32
    %c0_i32_0 = arith.constant 0 : i32
    %c0_i32_1 = arith.constant 0 : i32
    return %c0_i32, %c0_i32_0 : i32, i32
  }
  func.func @transform_6(%arg0: i32) -> (i32, i32) {
    %c0_i32 = arith.constant 0 : i32
    %c0_i32_0 = arith.constant 0 : i32
    %c0_i32_1 = arith.constant 0 : i32
    return %c0_i32, %c0_i32_0 : i32, i32
  }
  func.func @transform_7(%arg0: i32) -> (i32, i32, i32) {
    %c0_i32 = arith.constant 0 : i32
    %c0_i32_0 = arith.constant 0 : i32
    %c0_i32_1 = arith.constant 0 : i32
    %c0_i32_2 = arith.constant 0 : i32
    return %c0_i32, %c0_i32_0, %c0_i32_1 : i32, i32, i32
  }
  func.func @transform_8(%arg0: i32) -> (i32, i32) {
    %c0_i32 = arith.constant 0 : i32
    %c0_i32_0 = arith.constant 0 : i32
    %c0_i32_1 = arith.constant 0 : i32
    return %c0_i32, %c0_i32_0 : i32, i32
  }
  func.func @transform_9(%arg0: i32) -> (i32, i32, i32) {
    %c0_i32 = arith.constant 0 : i32
    %c0_i32_0 = arith.constant 0 : i32
    %c0_i32_1 = arith.constant 0 : i32
    return %arg0, %c0_i32, %c0_i32_0 : i32, i32, i32
  }
}

</mosaic_0001>

<llo_original>
// kernel: tpu_custom_call.1
$region0: #{tpu_custom_call.1}
  #allocation0 [shape = 'u32[]', space=smem, size = 0x4, offset = 0x4, fixed_abs, tag = 'smem constant byte address 0x4 - core index']
  #allocation1 [shape = 'u32[144,128]{1,0:T(1,128)}', space=vmem, size = 0x12000, scoped, tag = 'internal scratch']
  #allocation2 [shape = 'bf16[48,128]{1,0:T(16,128)(2,1)}', space=vmem, size = 0x3000, scoped, tag = 'scratch operand']
  %s0 = inlined_call_operand.vmem [shape: bf16[1,16,128], index: 0, kind: input, shape index: {}]
  %s1 = inlined_call_operand.hbm [shape: bf16[3,128,128], index: 1, kind: input, shape index: {}]
  %s2 = inlined_call_operand.vmem [shape: f32[1,128], index: 2, kind: input, shape index: {}]
  %s3 = inlined_call_operand.vmem [shape: bf16[128,32], index: 3, kind: input, shape index: {}]
  %s4 = inlined_call_operand.vmem [shape: bf16[32,128], index: 4, kind: input, shape index: {}]
  %s5 = inlined_call_operand.vmem [shape: f32[1,128], index: 5, kind: input, shape index: {}]
  %s6 = inlined_call_operand.vmem [shape: f32[1,128], index: 6, kind: input, shape index: {}]
  %s7 = inlined_call_operand.hbm [shape: bf16[3,128,256], index: 7, kind: input, shape index: {}]
  %s8 = inlined_call_operand.vmem [shape: f32[1,256], index: 8, kind: input, shape index: {}]
  %s9 = inlined_call_operand.hbm [shape: f32[1,16,256], index: 9, kind: output, shape index: {}]
  %s10 = sld [smem:[#allocation0]]
  $region54: #{tpu_custom_call.1} parent=0
    _
  %s12 = ssub.s32 1, %s10
  %s13 = scalar_select 0, %s12, %s10
  $region1: #{tpu_custom_call.1} parent=0
    #allocation3 [shape = 'u8[98304]{0}', space=vmem, size = 0x18000, scoped, tag = 'input window, operand 1, single buffered']
    #allocation4 [shape = 's32[1]{0}', space=sflag, size = 0x4, scoped, tag = 'scoped memory for tpu_custom_call.1']
    #allocation5 [shape = 's32[1]{0}', space=sflag, size = 0x4, scoped, tag = 'scoped memory for tpu_custom_call.1']
    #allocation6 [shape = 'u8[196608]{0}', space=vmem, size = 0x30000, scoped, tag = 'input window, operand 7, single buffered']
    #allocation7 [shape = 's32[1]{0}', space=sflag, size = 0x4, scoped, tag = 'scoped memory for tpu_custom_call.1']
    #allocation8 [shape = 'u8[16384]{0}', space=vmem, size = 0x4000, scoped, tag = 'output window, operand 0, single buffered']
    %14 = vsyncpa [#allocation4], 0
    %15 = vsyncpa [#allocation7], 0
    %16 = vsyncpa [#allocation5], 0
    // Predicated region
    $region2: #{tpu_custom_call.1} parent=1 // pred_check
      _
    $region3: #{tpu_custom_call.1} parent=1 // pred_check_branch
      %18 = sbr.rel (0) target = $region5
    $region4: #{tpu_custom_call.1} parent=1 // pred_region
      _
    $region5: #{tpu_custom_call.1} parent=1 // pred_fallthru
      _
    // Predicated region
    $region6: #{tpu_custom_call.1} parent=1 // pred_check
      _
    $region7: #{tpu_custom_call.1} parent=1 // pred_check_branch
      %20 = sbr.rel (0) target = $region9
    $region8: #{tpu_custom_call.1} parent=1 // pred_region
      %s22 = ssub.s32 3072, 3072
      %23 = vsyncadd [#allocation4], %s22
      %s24 = sshll.u32 [#allocation3], 4
      %s25 = int_to_ptr.vmem [resolvable:$true] %s24
      %30 = dma.hbm_to_vmem [thread:$0]  %s1, 3072, %s25, [#allocation4], 64, 64, 4
    $region9: #{tpu_custom_call.1} parent=1 // pred_fallthru
      _
    // Predicated region
    $region10: #{tpu_custom_call.1} parent=1 // pred_check
      _
    $region11: #{tpu_custom_call.1} parent=1 // pred_check_branch
      %32 = sbr.rel (0) target = $region13
    $region12: #{tpu_custom_call.1} parent=1 // pred_region
      _
    $region13: #{tpu_custom_call.1} parent=1 // pred_fallthru
      _
    // Predicated region
    $region14: #{tpu_custom_call.1} parent=1 // pred_check
      _
    $region15: #{tpu_custom_call.1} parent=1 // pred_check_branch
      %34 = sbr.rel (0) target = $region17
    $region16: #{tpu_custom_call.1} parent=1 // pred_region
      _
    $region17: #{tpu_custom_call.1} parent=1 // pred_fallthru
      _
    // Predicated region
    $region18: #{tpu_custom_call.1} parent=1 // pred_check
      _
    $region19: #{tpu_custom_call.1} parent=1 // pred_check_branch
      %36 = sbr.rel (0) target = $region21
    $region20: #{tpu_custom_call.1} parent=1 // pred_region
      _
    $region21: #{tpu_custom_call.1} parent=1 // pred_fallthru
      _
    // Predicated region
    $region22: #{tpu_custom_call.1} parent=1 // pred_check
      _
    $region23: #{tpu_custom_call.1} parent=1 // pred_check_branch
      %38 = sbr.rel (0) target = $region25
    $region24: #{tpu_custom_call.1} parent=1 // pred_region
      _
    $region25: #{tpu_custom_call.1} parent=1 // pred_fallthru
      _
    // Predicated region
    $region26: #{tpu_custom_call.1} parent=1 // pred_check
      _
    $region27: #{tpu_custom_call.1} parent=1 // pred_check_branch
      %40 = sbr.rel (0) target = $region29
    $region28: #{tpu_custom_call.1} parent=1 // pred_region
      _
    $region29: #{tpu_custom_call.1} parent=1 // pred_fallthru
      _
    // Predicated region
    $region30: #{tpu_custom_call.1} parent=1 // pred_check
      _
    $region31: #{tpu_custom_call.1} parent=1 // pred_check_branch
      %42 = sbr.rel (0) target = $region33
    $region32: #{tpu_custom_call.1} parent=1 // pred_region
      %s44 = ssub.s32 6144, 6144
      %45 = vsyncadd [#allocation7], %s44
      %s46 = sshll.u32 [#allocation6], 4
      %s47 = int_to_ptr.vmem [resolvable:$true] %s46
      %52 = dma.hbm_to_vmem [thread:$0]  %s7, 6144, %s47, [#allocation7], 128, 128, 8
    $region33: #{tpu_custom_call.1} parent=1 // pred_fallthru
      _
    // Predicated region
    $region34: #{tpu_custom_call.1} parent=1 // pred_check
      _
    $region35: #{tpu_custom_call.1} parent=1 // pred_check_branch
      %54 = sbr.rel (0) target = $region37
    $region36: #{tpu_custom_call.1} parent=1 // pred_region
      _
    $region37: #{tpu_custom_call.1} parent=1 // pred_fallthru
      _
    // Predicated region
    $region38: #{tpu_custom_call.1} parent=1 // pred_check
      _
    $region39: #{tpu_custom_call.1} parent=1 // pred_check_branch
      %56 = sbr.rel (0) target = $region41
    $region40: #{tpu_custom_call.1} parent=1 // pred_region
      %57 = dma.done [#allocation4], 3072
    $region41: #{tpu_custom_call.1} parent=1 // pred_fallthru
      _
    // Predicated region
    $region42: #{tpu_custom_call.1} parent=1 // pred_check
      _
    $region43: #{tpu_custom_call.1} parent=1 // pred_check_branch
      %59 = sbr.rel (0) target = $region45
    $region44: #{tpu_custom_call.1} parent=1 // pred_region
      %60 = dma.done [#allocation7], 6144
    $region45: #{tpu_custom_call.1} parent=1 // pred_fallthru
      _
    %62 = vst [vmem:[#allocation2] sm:$0x80] 0
    %63 = vst [vmem:[#allocation2 + $0x10] sm:$0x1] 0
    %v64 = vld [vmem:[%s0] sm:$0xf]
    %v65 = vld [vmem:[%s0 + $0x4] sm:$0xf]
    %v68 = vunpack.c.l.b16 %v64
    %v69 = vunpack.c.l.b16 %v65
    %v70 = vpack.c.b16 %v69, %v68
    %72 = vst [vmem:[#allocation2 + $0x8] sm:$0xff] %v70
    %v73 = vld [vmem:[#allocation2] sm:$0x80]
    %v74 = vld [vmem:[#allocation2 + $0x8] sm:$0xff]
    %v75 = vld [vmem:[#allocation3] sm:$0xf]
    %v76 = vld [vmem:[#allocation3 + $0x4] sm:$0xf]
    %v77 = vld [vmem:[#allocation3 + $0x8] sm:$0xf]
    %v78 = vld [vmem:[#allocation3 + $0xc] sm:$0xf]
    %v79 = vld [vmem:[#allocation3 + $0x10] sm:$0xf]
    %v80 = vld [vmem:[#allocation3 + $0x14] sm:$0xf]
    %v81 = vld [vmem:[#allocation3 + $0x18] sm:$0xf]
    %v82 = vld [vmem:[#allocation3 + $0x1c] sm:$0xf]
    %v83 = vld [vmem:[#allocation3 + $0x20] sm:$0xf]
    %v84 = vld [vmem:[#allocation3 + $0x24] sm:$0xf]
    %v85 = vld [vmem:[#allocation3 + $0x28] sm:$0xf]
    %v86 = vld [vmem:[#allocation3 + $0x2c] sm:$0xf]
    %v87 = vld [vmem:[#allocation3 + $0x30] sm:$0xf]
    %v88 = vld [vmem:[#allocation3 + $0x34] sm:$0xf]
    %v89 = vld [vmem:[#allocation3 + $0x38] sm:$0xf]
    %v90 = vld [vmem:[#allocation3 + $0x3c] sm:$0xf]
    %s91 = scalar_lea.vmem [#allocation3], 64
    %v92 = vld [vmem:[%s91] sm:$0xf]
    %v93 = vld [vmem:[%s91 + $0x4] sm:$0xf]
    %v94 = vld [vmem:[%s91 + $0x8] sm:$0xf]
    %v95 = vld [vmem:[%s91 + $0xc] sm:$0xf]
    %v96 = vld [vmem:[%s91 + $0x10] sm:$0xf]
    %v97 = vld [vmem:[%s91 + $0x14] sm:$0xf]
    %v98 = vld [vmem:[%s91 + $0x18] sm:$0xf]
    %v99 = vld [vmem:[%s91 + $0x1c] sm:$0xf]
    %v100 = vld [vmem:[%s91 + $0x20] sm:$0xf]
    %v101 = vld [vmem:[%s91 + $0x24] sm:$0xf]
    %v102 = vld [vmem:[%s91 + $0x28] sm:$0xf]
    %v103 = vld [vmem:[%s91 + $0x2c] sm:$0xf]
    %v104 = vld [vmem:[%s91 + $0x30] sm:$0xf]
    %v105 = vld [vmem:[%s91 + $0x34] sm:$0xf]
    %v106 = vld [vmem:[%s91 + $0x38] sm:$0xf]
    %v107 = vld [vmem:[%s91 + $0x3c] sm:$0xf]
    %v124 = vunpack.c.l.b16 %v92
    %v125 = vunpack.c.l.b16 %v93
    %v126 = vunpack.c.l.b16 %v94
    %v127 = vunpack.c.l.b16 %v95
    %v128 = vunpack.c.l.b16 %v96
    %v129 = vunpack.c.l.b16 %v97
    %v130 = vunpack.c.l.b16 %v98
    %v131 = vunpack.c.l.b16 %v99
    %v132 = vunpack.c.l.b16 %v100
    %v133 = vunpack.c.l.b16 %v101
    %v134 = vunpack.c.l.b16 %v102
    %v135 = vunpack.c.l.b16 %v103
    %v136 = vunpack.c.l.b16 %v104
    %v137 = vunpack.c.l.b16 %v105
    %v138 = vunpack.c.l.b16 %v106
    %v139 = vunpack.c.l.b16 %v107
    %v140 = vpack.c.b16 %v125, %v124
    %v141 = vpack.c.b16 %v127, %v126
    %v142 = vpack.c.b16 %v129, %v128
    %v143 = vpack.c.b16 %v131, %v130
    %v144 = vpack.c.b16 %v133, %v132
    %v145 = vpack.c.b16 %v135, %v134
    %v146 = vpack.c.b16 %v137, %v136
    %v147 = vpack.c.b16 %v139, %v138
    %156 = vmatprep.subr.bf16.mxu0 0
    %157 = vmatpush1.bf16.msra.mxu0 %v140
    %158 = vmatprep.subr.bf16.mxu0 0
    %159 = vmatpush1.bf16.msra.mxu0 %v141
    %160 = vmatprep.subr.bf16.mxu0 0
    %161 = vmatpush1.bf16.msra.mxu0 %v142
    %162 = vmatprep.subr.bf16.mxu0 0
    %163 = vmatpush1.bf16.msra.mxu0 %v143
    %164 = vmatprep.subr.bf16.mxu0 0
    %165 = vmatpush1.bf16.msra.mxu0 %v144
    %166 = vmatprep.subr.bf16.mxu0 0
    %167 = vmatpush1.bf16.msra.mxu0 %v145
    %168 = vmatprep.subr.bf16.mxu0 0
    %169 = vmatpush1.bf16.msra.mxu0 %v146
    %170 = vmatprep.subr.bf16.mxu0 0
    %171 = vmatpush1.bf16.msra.mxu0 %v147
    %172 = vmatprep.subr.bf16.mxu0 0
    %173 = vmatpush1.bf16.msra.mxu0 0
    %174 = vmatprep.subr.bf16.mxu0 0
    %175 = vmatpush1.bf16.msra.mxu0 0
    %176 = vmatprep.subr.bf16.mxu0 0
    %177 = vmatpush1.bf16.msra.mxu0 0
    %178 = vmatprep.subr.bf16.mxu0 0
    %179 = vmatpush1.bf16.msra.mxu0 0
    %180 = vmatprep.subr.bf16.mxu0 0
    %181 = vmatpush1.bf16.msra.mxu0 0
    %182 = vmatprep.subr.bf16.mxu0 0
    %183 = vmatpush1.bf16.msra.mxu0 0
    %184 = vmatprep.subr.bf16.mxu0 0
    %185 = vmatpush1.bf16.msra.mxu0 0
    %186 = vmatprep.subr.bf16.mxu0 0
    %187 = vmatpush1.bf16.msra.mxu0 0
    %188 = vmatprep.mubr.bf16.mxu0 0
    %189 = vmatmul.mubr.bf16.gmra.mrb[0].mxu0 %v74
    %v190 = vpop.f32.mrb[0].mxu0
    %v191 = vadd.f32 0.0, %v190
    %v192 = vpop.f32.mrb[0].mxu0
    %v193 = vpop.f32.mrb[0].mxu0
    %v194 = vadd.f32 0.0, %v193
    %v195 = vpop.f32.mrb[0].mxu0
    %196 = vdwg.mxu0
    %vm197 = vsmask.f32 256
    %v199 = vshrl.u32 %v73, 16
    %v201 = vrot.slane %v199, 7
    %v203 = vshrl.u32 %v74, 16
    %v205 = vrot.slane %v203, 7
    %v206 = vshll.u32 %v74, 16
    %v208 = vor.u32 %v205, %v206
    %v209 = vsel %vm197, %v201, %v208
    %v227 = vunpack.c.l.b16 %v75
    %v228 = vunpack.c.l.b16 %v76
    %v229 = vunpack.c.l.b16 %v77
    %v230 = vunpack.c.l.b16 %v78
    %v231 = vunpack.c.l.b16 %v79
    %v232 = vunpack.c.l.b16 %v80
    %v233 = vunpack.c.l.b16 %v81
    %v234 = vunpack.c.l.b16 %v82
    %v235 = vunpack.c.l.b16 %v83
    %v236 = vunpack.c.l.b16 %v84
    %v237 = vunpack.c.l.b16 %v85
    %v238 = vunpack.c.l.b16 %v86
    %v239 = vunpack.c.l.b16 %v87
    %v240 = vunpack.c.l.b16 %v88
    %v241 = vunpack.c.l.b16 %v89
    %v242 = vunpack.c.l.b16 %v90
    %v243 = vpack.c.b16 %v228, %v227
    %v244 = vpack.c.b16 %v230, %v229
    %v245 = vpack.c.b16 %v232, %v231
    %v246 = vpack.c.b16 %v234, %v233
    %v247 = vpack.c.b16 %v236, %v235
    %v248 = vpack.c.b16 %v238, %v237
    %v249 = vpack.c.b16 %v240, %v239
    %v250 = vpack.c.b16 %v242, %v241
    %259 = vmatprep.subr.bf16.mxu0 0
    %260 = vmatpush1.bf16.msra.mxu0 %v243
    %261 = vmatprep.subr.bf16.mxu0 0
    %262 = vmatpush1.bf16.msra.mxu0 %v244
    %263 = vmatprep.subr.bf16.mxu0 0
    %264 = vmatpush1.bf16.msra.mxu0 %v245
    %265 = vmatprep.subr.bf16.mxu0 0
    %266 = vmatpush1.bf16.msra.mxu0 %v246
    %267 = vmatprep.subr.bf16.mxu0 0
    %268 = vmatpush1.bf16.msra.mxu0 %v247
    %269 = vmatprep.subr.bf16.mxu0 0
    %270 = vmatpush1.bf16.msra.mxu0 %v248
    %271 = vmatprep.subr.bf16.mxu0 0
    %272 = vmatpush1.bf16.msra.mxu0 %v249
    %273 = vmatprep.subr.bf16.mxu0 0
    %274 = vmatpush1.bf16.msra.mxu0 %v250
    %275 = vmatprep.subr.bf16.mxu0 0
    %276 = vmatpush1.bf16.msra.mxu0 0
    %277 = vmatprep.subr.bf16.mxu0 0
    %278 = vmatpush1.bf16.msra.mxu0 0
    %279 = vmatprep.subr.bf16.mxu0 0
    %280 = vmatpush1.bf16.msra.mxu0 0
    %281 = vmatprep.subr.bf16.mxu0 0
    %282 = vmatpush1.bf16.msra.mxu0 0
    %283 = vmatprep.subr.bf16.mxu0 0
    %284 = vmatpush1.bf16.msra.mxu0 0
    %285 = vmatprep.subr.bf16.mxu0 0
    %286 = vmatpush1.bf16.msra.mxu0 0
    %287 = vmatprep.subr.bf16.mxu0 0
    %288 = vmatpush1.bf16.msra.mxu0 0
    %289 = vmatprep.subr.bf16.mxu0 0
    %290 = vmatpush1.bf16.msra.mxu0 0
    %291 = vmatprep.mubr.bf16.mxu0 0
    %292 = vmatmul.mubr.bf16.gmra.mrb[0].mxu0 %v209
    %v293 = vpop.f32.mrb[0].mxu0
    %v294 = vadd.f32 %v191, %v293
    %v295 = vpop.f32.mrb[0].mxu0
    %v296 = vpop.f32.mrb[0].mxu0
    %v297 = vadd.f32 %v194, %v296
    %v298 = vpop.f32.mrb[0].mxu0
    %299 = vdwg.mxu0
    %v300 = vld [vmem:[#allocation2 + $0x8] sm:$0xff]
    %v301 = vld [vmem:[#allocation2 + $0x10] sm:$0x1]
    %s302 = scalar_lea.vmem [#allocation3], 128
    %v303 = vld [vmem:[%s302] sm:$0xf]
    %v304 = vld [vmem:[%s302 + $0x4] sm:$0xf]
    %v305 = vld [vmem:[%s302 + $0x8] sm:$0xf]
    %v306 = vld [vmem:[%s302 + $0xc] sm:$0xf]
    %v307 = vld [vmem:[%s302 + $0x10] sm:$0xf]
    %v308 = vld [vmem:[%s302 + $0x14] sm:$0xf]
    %v309 = vld [vmem:[%s302 + $0x18] sm:$0xf]
    %v310 = vld [vmem:[%s302 + $0x1c] sm:$0xf]
    %v311 = vld [vmem:[%s302 + $0x20] sm:$0xf]
    %v312 = vld [vmem:[%s302 + $0x24] sm:$0xf]
    %v313 = vld [vmem:[%s302 + $0x28] sm:$0xf]
    %v314 = vld [vmem:[%s302 + $0x2c] sm:$0xf]
    %v315 = vld [vmem:[%s302 + $0x30] sm:$0xf]
    %v316 = vld [vmem:[%s302 + $0x34] sm:$0xf]
    %v317 = vld [vmem:[%s302 + $0x38] sm:$0xf]
    %v318 = vld [vmem:[%s302 + $0x3c] sm:$0xf]
    %vm319 = vsmask.f32 7424
    %v321 = vshrl.u32 %v300, 16
    %v323 = vshll.u32 %v300, 16
    %v325 = vrot.slane %v323, 1
    %v326 = vor.u32 %v321, %v325
    %v328 = vshll.u32 %v301, 16
    %v330 = vrot.slane %v328, 1
    %v331 = vsel %vm319, %v326, %v330
    %v349 = vunpack.c.l.b16 %v303
    %v350 = vunpack.c.l.b16 %v304
    %v351 = vunpack.c.l.b16 %v305
    %v352 = vunpack.c.l.b16 %v306
    %v353 = vunpack.c.l.b16 %v307
    %v354 = vunpack.c.l.b16 %v308
    %v355 = vunpack.c.l.b16 %v309
    %v356 = vunpack.c.l.b16 %v310
    %v357 = vunpack.c.l.b16 %v311
    %v358 = vunpack.c.l.b16 %v312
    %v359 = vunpack.c.l.b16 %v313
    %v360 = vunpack.c.l.b16 %v314
    %v361 = vunpack.c.l.b16 %v315
    %v362 = vunpack.c.l.b16 %v316
    %v363 = vunpack.c.l.b16 %v317
    %v364 = vunpack.c.l.b16 %v318
    %v365 = vpack.c.b16 %v350, %v349
    %v366 = vpack.c.b16 %v352, %v351
    %v367 = vpack.c.b16 %v354, %v353
    %v368 = vpack.c.b16 %v356, %v355
    %v369 = vpack.c.b16 %v358, %v357
    %v370 = vpack.c.b16 %v360, %v359
    %v371 = vpack.c.b16 %v362, %v361
    %v372 = vpack.c.b16 %v364, %v363
    %381 = vmatprep.subr.bf16.mxu0 0
    %382 = vmatpush1.bf16.msra.mxu0 %v365
    %383 = vmatprep.subr.bf16.mxu0 0
    %384 = vmatpush1.bf16.msra.mxu0 %v366
    %385 = vmatprep.subr.bf16.mxu0 0
    %386 = vmatpush1.bf16.msra.mxu0 %v367
    %387 = vmatprep.subr.bf16.mxu0 0
    %388 = vmatpush1.bf16.msra.mxu0 %v368
    %389 = vmatprep.subr.bf16.mxu0 0
    %390 = vmatpush1.bf16.msra.mxu0 %v369
    %391 = vmatprep.subr.bf16.mxu0 0
    %392 = vmatpush1.bf16.msra.mxu0 %v370
    %393 = vmatprep.subr.bf16.mxu0 0
    %394 = vmatpush1.bf16.msra.mxu0 %v371
    %395 = vmatprep.subr.bf16.mxu0 0
    %396 = vmatpush1.bf16.msra.mxu0 %v372
    %397 = vmatprep.subr.bf16.mxu0 0
    %398 = vmatpush1.bf16.msra.mxu0 0
    %399 = vmatprep.subr.bf16.mxu0 0
    %400 = vmatpush1.bf16.msra.mxu0 0
    %401 = vmatprep.subr.bf16.mxu0 0
    %402 = vmatpush1.bf16.msra.mxu0 0
    %403 = vmatprep.subr.bf16.mxu0 0
    %404 = vmatpush1.bf16.msra.mxu0 0
    %405 = vmatprep.subr.bf16.mxu0 0
    %406 = vmatpush1.bf16.msra.mxu0 0
    %407 = vmatprep.subr.bf16.mxu0 0
    %408 = vmatpush1.bf16.msra.mxu0 0
    %409 = vmatprep.subr.bf16.mxu0 0
    %410 = vmatpush1.bf16.msra.mxu0 0
    %411 = vmatprep.subr.bf16.mxu0 0
    %412 = vmatpush1.bf16.msra.mxu0 0
    %413 = vmatprep.mubr.bf16.mxu0 0
    %414 = vmatmul.mubr.bf16.gmra.mrb[0].mxu0 %v331
    %v415 = vpop.f32.mrb[0].mxu0
    %v416 = vadd.f32 0.0, %v415
    %v417 = vpop.f32.mrb[0].mxu0
    %v418 = vpop.f32.mrb[0].mxu0
    %v419 = vadd.f32 0.0, %v418
    %v420 = vpop.f32.mrb[0].mxu0
    %421 = vdwg.mxu0
    %v422 = vadd.f32 %v294, %v416
    %v423 = vadd.f32 %v297, %v419
    %v424 = vld [vmem:[%s2] sm:$0x1]
    %v426 = vlaneseq
    %v427 = vshrl.u32 %v426, 7
    %v428 = vsub.s32 0, %v427
    %v429 = vrot.slane %v424, %v428
    %v431 = vadd.f32 %v422, %v429
    %v432 = vadd.f32 %v423, %v429
    %v433 = vpack.c.bf16 %v432, %v431
    %v434 = vunpack.c.l.bf16 %v433
    %v435 = vunpack.c.h.bf16 %v433
    %v436 = vsub.f32 %v431, %v434
    %v437 = vsub.f32 %v432, %v435
    %v438 = vpack.c.bf16 %v437, %v436
    %v439 = vld [vmem:[%s3] sm:$0xf]
    %v440 = vld [vmem:[%s3 + $0x4] sm:$0xf]
    %v441 = vld [vmem:[%s3 + $0x8] sm:$0xf]
    %v442 = vld [vmem:[%s3 + $0xc] sm:$0xf]
    %v443 = vld [vmem:[%s3 + $0x10] sm:$0xf]
    %v444 = vld [vmem:[%s3 + $0x14] sm:$0xf]
    %v445 = vld [vmem:[%s3 + $0x18] sm:$0xf]
    %v446 = vld [vmem:[%s3 + $0x1c] sm:$0xf]
    %v447 = vld [vmem:[%s3 + $0x20] sm:$0xf]
    %v448 = vld [vmem:[%s3 + $0x24] sm:$0xf]
    %v449 = vld [vmem:[%s3 + $0x28] sm:$0xf]
    %v450 = vld [vmem:[%s3 + $0x2c] sm:$0xf]
    %v451 = vld [vmem:[%s3 + $0x30] sm:$0xf]
    %v452 = vld [vmem:[%s3 + $0x34] sm:$0xf]
    %v453 = vld [vmem:[%s3 + $0x38] sm:$0xf]
    %v454 = vld [vmem:[%s3 + $0x3c] sm:$0xf]
    %v471 = vunpack.c.l.b16 %v439
    %v472 = vunpack.c.l.b16 %v440
    %v473 = vunpack.c.l.b16 %v441
    %v474 = vunpack.c.l.b16 %v442
    %v475 = vunpack.c.l.b16 %v443
    %v476 = vunpack.c.l.b16 %v444
    %v477 = vunpack.c.l.b16 %v445
    %v478 = vunpack.c.l.b16 %v446
    %v479 = vunpack.c.l.b16 %v447
    %v480 = vunpack.c.l.b16 %v448
    %v481 = vunpack.c.l.b16 %v449
    %v482 = vunpack.c.l.b16 %v450
    %v483 = vunpack.c.l.b16 %v451
    %v484 = vunpack.c.l.b16 %v452
    %v485 = vunpack.c.l.b16 %v453
    %v486 = vunpack.c.l.b16 %v454
    %v487 = vpack.c.b16 %v472, %v471
    %v488 = vpack.c.b16 %v474, %v473
    %v489 = vpack.c.b16 %v476, %v475
    %v490 = vpack.c.b16 %v478, %v477
    %v491 = vpack.c.b16 %v480, %v479
    %v492 = vpack.c.b16 %v482, %v481
    %v493 = vpack.c.b16 %v484, %v483
    %v494 = vpack.c.b16 %v486, %v485
    %503 = vmatprep.subr.bf16.mxu0 0
    %504 = vmatpush1.bf16.msra.mxu0 %v487
    %505 = vmatprep.subr.bf16.mxu0 0
    %506 = vmatpush1.bf16.msra.mxu0 %v488
    %507 = vmatprep.subr.bf16.mxu0 0
    %508 = vmatpush1.bf16.msra.mxu0 %v489
    %509 = vmatprep.subr.bf16.mxu0 0
    %510 = vmatpush1.bf16.msra.mxu0 %v490
    %511 = vmatprep.subr.bf16.mxu0 0
    %512 = vmatpush1.bf16.msra.mxu0 %v491
    %513 = vmatprep.subr.bf16.mxu0 0
    %514 = vmatpush1.bf16.msra.mxu0 %v492
    %515 = vmatprep.subr.bf16.mxu0 0
    %516 = vmatpush1.bf16.msra.mxu0 %v493
    %517 = vmatprep.subr.bf16.mxu0 0
    %518 = vmatpush1.bf16.msra.mxu0 %v494
    %519 = vmatprep.subr.bf16.mxu0 0
    %520 = vmatpush1.bf16.msra.mxu0 0
    %521 = vmatprep.subr.bf16.mxu0 0
    %522 = vmatpush1.bf16.msra.mxu0 0
    %523 = vmatprep.subr.bf16.mxu0 0
    %524 = vmatpush1.bf16.msra.mxu0 0
    %525 = vmatprep.subr.bf16.mxu0 0
    %526 = vmatpush1.bf16.msra.mxu0 0
    %527 = vmatprep.subr.bf16.mxu0 0
    %528 = vmatpush1.bf16.msra.mxu0 0
    %529 = vmatprep.subr.bf16.mxu0 0
    %530 = vmatpush1.bf16.msra.mxu0 0
    %531 = vmatprep.subr.bf16.mxu0 0
    %532 = vmatpush1.bf16.msra.mxu0 0
    %533 = vmatprep.subr.bf16.mxu0 0
    %534 = vmatpush1.bf16.msra.mxu0 0
    %535 = vmatprep.mubr.bf16.mxu0 0
    %536 = vmatmul.mubr.bf16.gmra.mrb[0].mxu0 %v438
    %v537 = vpop.f32.mrb[0].mxu0
    %v538 = vadd.f32 0.0, %v537
    %v539 = vpop.f32.mrb[0].mxu0
    %v540 = vpop.f32.mrb[0].mxu0
    %v541 = vadd.f32 0.0, %v540
    %v542 = vpop.f32.mrb[0].mxu0
    %543 = vdwg.mxu0
    %544 = vmatprep.subr.bf16.mxu0 0
    %545 = vmatpush1.bf16.msra.mxu0 %v487
    %546 = vmatprep.subr.bf16.mxu0 0
    %547 = vmatpush1.bf16.msra.mxu0 %v488
    %548 = vmatprep.subr.bf16.mxu0 0
    %549 = vmatpush1.bf16.msra.mxu0 %v489
    %550 = vmatprep.subr.bf16.mxu0 0
    %551 = vmatpush1.bf16.msra.mxu0 %v490
    %552 = vmatprep.subr.bf16.mxu0 0
    %553 = vmatpush1.bf16.msra.mxu0 %v491
    %554 = vmatprep.subr.bf16.mxu0 0
    %555 = vmatpush1.bf16.msra.mxu0 %v492
    %556 = vmatprep.subr.bf16.mxu0 0
    %557 = vmatpush1.bf16.msra.mxu0 %v493
    %558 = vmatprep.subr.bf16.mxu0 0
    %559 = vmatpush1.bf16.msra.mxu0 %v494
    %560 = vmatprep.subr.bf16.mxu0 0
    %561 = vmatpush1.bf16.msra.mxu0 0
    %562 = vmatprep.subr.bf16.mxu0 0
    %563 = vmatpush1.bf16.msra.mxu0 0
    %564 = vmatprep.subr.bf16.mxu0 0
    %565 = vmatpush1.bf16.msra.mxu0 0
    %566 = vmatprep.subr.bf16.mxu0 0
    %567 = vmatpush1.bf16.msra.mxu0 0
    %568 = vmatprep.subr.bf16.mxu0 0
    %569 = vmatpush1.bf16.msra.mxu0 0
    %570 = vmatprep.subr.bf16.mxu0 0
    %571 = vmatpush1.bf16.msra.mxu0 0
    %572 = vmatprep.subr.bf16.mxu0 0
    %573 = vmatpush1.bf16.msra.mxu0 0
    %574 = vmatprep.subr.bf16.mxu0 0
    %575 = vmatpush1.bf16.msra.mxu0 0
    %576 = vmatprep.mubr.bf16.mxu0 0
    %577 = vmatmul.mubr.bf16.gmra.mrb[0].mxu0 %v433
    %v578 = vpop.f32.mrb[0].mxu0
    %v579 = vadd.f32 %v538, %v578
    %v580 = vpop.f32.mrb[0].mxu0
    %v581 = vpop.f32.mrb[0].mxu0
    %v582 = vadd.f32 %v541, %v581
    %v583 = vpop.f32.mrb[0].mxu0
    %584 = vdwg.mxu0
    %v585 = vmul.f32 %v579, 0.25
    %v586 = vmul.f32 %v582, 0.25
    %v587 = vmul.f32 %v431, %v431
    %v588 = vmul.f32 %v432, %v432
    %v589 = vpack.c.bf16 %v588, %v587
    %v590 = vunpack.c.l.bf16 %v589
    %v591 = vunpack.c.h.bf16 %v589
    %v592 = vsub.f32 %v587, %v590
    %v593 = vsub.f32 %v588, %v591
    %v594 = vpack.c.bf16 %v593, %v592
    %595 = vmatprep.subr.bf16.mxu0 0
    %596 = vmatpush1.bf16.msra.mxu0 %v487
    %597 = vmatprep.subr.bf16.mxu0 0
    %598 = vmatpush1.bf16.msra.mxu0 %v488
    %599 = vmatprep.subr.bf16.mxu0 0
    %600 = vmatpush1.bf16.msra.mxu0 %v489
    %601 = vmatprep.subr.bf16.mxu0 0
    %602 = vmatpush1.bf16.msra.mxu0 %v490
    %603 = vmatprep.subr.bf16.mxu0 0
    %604 = vmatpush1.bf16.msra.mxu0 %v491
    %605 = vmatprep.subr.bf16.mxu0 0
    %606 = vmatpush1.bf16.msra.mxu0 %v492
    %607 = vmatprep.subr.bf16.mxu0 0
    %608 = vmatpush1.bf16.msra.mxu0 %v493
    %609 = vmatprep.subr.bf16.mxu0 0
    %610 = vmatpush1.bf16.msra.mxu0 %v494
    %611 = vmatprep.subr.bf16.mxu0 0
    %612 = vmatpush1.bf16.msra.mxu0 0
    %613 = vmatprep.subr.bf16.mxu0 0
    %614 = vmatpush1.bf16.msra.mxu0 0
    %615 = vmatprep.subr.bf16.mxu0 0
    %616 = vmatpush1.bf16.msra.mxu0 0
    %617 = vmatprep.subr.bf16.mxu0 0
    %618 = vmatpush1.bf16.msra.mxu0 0
    %619 = vmatprep.subr.bf16.mxu0 0
    %620 = vmatpush1.bf16.msra.mxu0 0
    %621 = vmatprep.subr.bf16.mxu0 0
    %622 = vmatpush1.bf16.msra.mxu0 0
    %623 = vmatprep.subr.bf16.mxu0 0
    %624 = vmatpush1.bf16.msra.mxu0 0
    %625 = vmatprep.subr.bf16.mxu0 0
    %626 = vmatpush1.bf16.msra.mxu0 0
    %627 = vmatprep.mubr.bf16.mxu0 0
    %628 = vmatmul.mubr.bf16.gmra.mrb[0].mxu0 %v594
    %v629 = vpop.f32.mrb[0].mxu0
    %v630 = vadd.f32 0.0, %v629
    %v631 = vpop.f32.mrb[0].mxu0
    %v632 = vpop.f32.mrb[0].mxu0
    %v633 = vadd.f32 0.0, %v632
    %v634 = vpop.f32.mrb[0].mxu0
    %635 = vdwg.mxu0
    %636 = vmatprep.subr.bf16.mxu0 0
    %637 = vmatpush1.bf16.msra.mxu0 %v487
    %638 = vmatprep.subr.bf16.mxu0 0
    %639 = vmatpush1.bf16.msra.mxu0 %v488
    %640 = vmatprep.subr.bf16.mxu0 0
    %641 = vmatpush1.bf16.msra.mxu0 %v489
    %642 = vmatprep.subr.bf16.mxu0 0
    %643 = vmatpush1.bf16.msra.mxu0 %v490
    %644 = vmatprep.subr.bf16.mxu0 0
    %645 = vmatpush1.bf16.msra.mxu0 %v491
    %646 = vmatprep.subr.bf16.mxu0 0
    %647 = vmatpush1.bf16.msra.mxu0 %v492
    %648 = vmatprep.subr.bf16.mxu0 0
    %649 = vmatpush1.bf16.msra.mxu0 %v493
    %650 = vmatprep.subr.bf16.mxu0 0
    %651 = vmatpush1.bf16.msra.mxu0 %v494
    %652 = vmatprep.subr.bf16.mxu0 0
    %653 = vmatpush1.bf16.msra.mxu0 0
    %654 = vmatprep.subr.bf16.mxu0 0
    %655 = vmatpush1.bf16.msra.mxu0 0
    %656 = vmatprep.subr.bf16.mxu0 0
    %657 = vmatpush1.bf16.msra.mxu0 0
    %658 = vmatprep.subr.bf16.mxu0 0
    %659 = vmatpush1.bf16.msra.mxu0 0
    %660 = vmatprep.subr.bf16.mxu0 0
    %661 = vmatpush1.bf16.msra.mxu0 0
    %662 = vmatprep.subr.bf16.mxu0 0
    %663 = vmatpush1.bf16.msra.mxu0 0
    %664 = vmatprep.subr.bf16.mxu0 0
    %665 = vmatpush1.bf16.msra.mxu0 0
    %666 = vmatprep.subr.bf16.mxu0 0
    %667 = vmatpush1.bf16.msra.mxu0 0
    %668 = vmatprep.mubr.bf16.mxu0 0
    %669 = vmatmul.mubr.bf16.gmra.mrb[0].mxu0 %v589
    %v670 = vpop.f32.mrb[0].mxu0
    %v671 = vadd.f32 %v630, %v670
    %v672 = vpop.f32.mrb[0].mxu0
    %v673 = vpop.f32.mrb[0].mxu0
    %v674 = vadd.f32 %v633, %v673
    %v675 = vpop.f32.mrb[0].mxu0
    %676 = vdwg.mxu0
    %v677 = vmul.f32 %v671, 0.25
    %v678 = vmul.f32 %v674, 0.25
    %v679 = vmul.f32 %v585, %v585
    %v680 = vmul.f32 %v586, %v586
    %v681 = vsub.f32 %v677, %v679
    %v682 = vsub.f32 %v678, %v680
    %v683 = vmax.f32 %v681, 0.0
    %v684 = vmax.f32 %v682, 0.0
    %v685 = vadd.f32 %v683, 1e-05
    %v686 = vadd.f32 %v684, 1e-05
    %v687 = vrsqrt.pop %v685
    %v688 = vrsqrt.pop %v686
    %v689 = vpack.c.bf16 %v586, %v585
    %v690 = vunpack.c.l.bf16 %v689
    %v691 = vunpack.c.h.bf16 %v689
    %v692 = vsub.f32 %v585, %v690
    %v693 = vsub.f32 %v586, %v691
    %v694 = vpack.c.bf16 %v693, %v692
    %v695 = vld [vmem:[%s4] sm:$0xf]
    %v696 = vld [vmem:[%s4 + $0x4] sm:$0xf]
    %v697 = vld [vmem:[%s4 + $0x8] sm:$0xf]
    %v698 = vld [vmem:[%s4 + $0xc] sm:$0xf]
    %v703 = vunpack.c.l.b16 %v695
    %v704 = vunpack.c.l.b16 %v696
    %v705 = vunpack.c.l.b16 %v697
    %v706 = vunpack.c.l.b16 %v698
    %v707 = vpack.c.b16 %v704, %v703
    %v708 = vpack.c.b16 %v706, %v705
    %vm711 = vcmask 261120
    %v713 = vsel %vm711, %v694, 0
    %715 = vmatprep.subr.bf16.mxu0 0
    %716 = vmatpush1.bf16.msra.mxu0 %v707
    %717 = vmatprep.subr.bf16.mxu0 0
    %718 = vmatpush1.bf16.msra.mxu0 %v708
    %719 = vmatprep.subr.bf16.mxu0 0
    %720 = vmatpush1.bf16.msra.mxu0 0
    %721 = vmatprep.subr.bf16.mxu0 0
    %722 = vmatpush1.bf16.msra.mxu0 0
    %723 = vmatprep.subr.bf16.mxu0 0
    %724 = vmatpush1.bf16.msra.mxu0 0
    %725 = vmatprep.subr.bf16.mxu0 0
    %726 = vmatpush1.bf16.msra.mxu0 0
    %727 = vmatprep.subr.bf16.mxu0 0
    %728 = vmatpush1.bf16.msra.mxu0 0
    %729 = vmatprep.subr.bf16.mxu0 0
    %730 = vmatpush1.bf16.msra.mxu0 0
    %731 = vmatprep.subr.bf16.mxu0 0
    %732 = vmatpush1.bf16.msra.mxu0 0
    %733 = vmatprep.subr.bf16.mxu0 0
    %734 = vmatpush1.bf16.msra.mxu0 0
    %735 = vmatprep.subr.bf16.mxu0 0
    %736 = vmatpush1.bf16.msra.mxu0 0
    %737 = vmatprep.subr.bf16.mxu0 0
    %738 = vmatpush1.bf16.msra.mxu0 0
    %739 = vmatprep.subr.bf16.mxu0 0
    %740 = vmatpush1.bf16.msra.mxu0 0
    %741 = vmatprep.subr.bf16.mxu0 0
    %742 = vmatpush1.bf16.msra.mxu0 0
    %743 = vmatprep.subr.bf16.mxu0 0
    %744 = vmatpush1.bf16.msra.mxu0 0
    %745 = vmatprep.subr.bf16.mxu0 0
    %746 = vmatpush1.bf16.msra.mxu0 0
    %747 = vmatprep.mubr.bf16.mxu0 0
    %748 = vmatmul.mubr.bf16.gmra.mrb[0].mxu0 %v713
    %v749 = vpop.f32.mrb[0].mxu0
    %v750 = vadd.f32 0.0, %v749
    %v751 = vpop.f32.mrb[0].mxu0
    %v752 = vpop.f32.mrb[0].mxu0
    %v753 = vadd.f32 0.0, %v752
    %v754 = vpop.f32.mrb[0].mxu0
    %755 = vdwg.mxu0
    %v757 = vsel %vm711, %v689, 0
    %759 = vmatprep.subr.bf16.mxu0 0
    %760 = vmatpush1.bf16.msra.mxu0 %v707
    %761 = vmatprep.subr.bf16.mxu0 0
    %762 = vmatpush1.bf16.msra.mxu0 %v708
    %763 = vmatprep.subr.bf16.mxu0 0
    %764 = vmatpush1.bf16.msra.mxu0 0
    %765 = vmatprep.subr.bf16.mxu0 0
    %766 = vmatpush1.bf16.msra.mxu0 0
    %767 = vmatprep.subr.bf16.mxu0 0
    %768 = vmatpush1.bf16.msra.mxu0 0
    %769 = vmatprep.subr.bf16.mxu0 0
    %770 = vmatpush1.bf16.msra.mxu0 0
    %771 = vmatprep.subr.bf16.mxu0 0
    %772 = vmatpush1.bf16.msra.mxu0 0
    %773 = vmatprep.subr.bf16.mxu0 0
    %774 = vmatpush1.bf16.msra.mxu0 0
    %775 = vmatprep.subr.bf16.mxu0 0
    %776 = vmatpush1.bf16.msra.mxu0 0
    %777 = vmatprep.subr.bf16.mxu0 0
    %778 = vmatpush1.bf16.msra.mxu0 0
    %779 = vmatprep.subr.bf16.mxu0 0
    %780 = vmatpush1.bf16.msra.mxu0 0
    %781 = vmatprep.subr.bf16.mxu0 0
    %782 = vmatpush1.bf16.msra.mxu0 0
    %783 = vmatprep.subr.bf16.mxu0 0
    %784 = vmatpush1.bf16.msra.mxu0 0
    %785 = vmatprep.subr.bf16.mxu0 0
    %786 = vmatpush1.bf16.msra.mxu0 0
    %787 = vmatprep.subr.bf16.mxu0 0
    %788 = vmatpush1.bf16.msra.mxu0 0
    %789 = vmatprep.subr.bf16.mxu0 0
    %790 = vmatpush1.bf16.msra.mxu0 0
    %791 = vmatprep.mubr.bf16.mxu0 0
    %792 = vmatmul.mubr.bf16.gmra.mrb[0].mxu0 %v757
    %v793 = vpop.f32.mrb[0].mxu0
    %v794 = vadd.f32 %v750, %v793
    %v795 = vpop.f32.mrb[0].mxu0
    %v796 = vpop.f32.mrb[0].mxu0
    %v797 = vadd.f32 %v753, %v796
    %v798 = vpop.f32.mrb[0].mxu0
    %799 = vdwg.mxu0
    %v800 = vsub.f32 %v431, %v794
    %v801 = vsub.f32 %v432, %v797
    %v802 = vpack.c.bf16 %v688, %v687
    %v803 = vunpack.c.l.bf16 %v802
    %v804 = vunpack.c.h.bf16 %v802
    %v805 = vsub.f32 %v687, %v803
    %v806 = vsub.f32 %v688, %v804
    %v807 = vpack.c.bf16 %v806, %v805
    %v809 = vsel %vm711, %v807, 0
    %811 = vmatprep.subr.bf16.mxu0 0
    %812 = vmatpush1.bf16.msra.mxu0 %v707
    %813 = vmatprep.subr.bf16.mxu0 0
    %814 = vmatpush1.bf16.msra.mxu0 %v708
    %815 = vmatprep.subr.bf16.mxu0 0
    %816 = vmatpush1.bf16.msra.mxu0 0
    %817 = vmatprep.subr.bf16.mxu0 0
    %818 = vmatpush1.bf16.msra.mxu0 0
    %819 = vmatprep.subr.bf16.mxu0 0
    %820 = vmatpush1.bf16.msra.mxu0 0
    %821 = vmatprep.subr.bf16.mxu0 0
    %822 = vmatpush1.bf16.msra.mxu0 0
    %823 = vmatprep.subr.bf16.mxu0 0
    %824 = vmatpush1.bf16.msra.mxu0 0
    %825 = vmatprep.subr.bf16.mxu0 0
    %826 = vmatpush1.bf16.msra.mxu0 0
    %827 = vmatprep.subr.bf16.mxu0 0
    %828 = vmatpush1.bf16.msra.mxu0 0
    %829 = vmatprep.subr.bf16.mxu0 0
    %830 = vmatpush1.bf16.msra.mxu0 0
    %831 = vmatprep.subr.bf16.mxu0 0
    %832 = vmatpush1.bf16.msra.mxu0 0
    %833 = vmatprep.subr.bf16.mxu0 0
    %834 = vmatpush1.bf16.msra.mxu0 0
    %835 = vmatprep.subr.bf16.mxu0 0
    %836 = vmatpush1.bf16.msra.mxu0 0
    %837 = vmatprep.subr.bf16.mxu0 0
    %838 = vmatpush1.bf16.msra.mxu0 0
    %839 = vmatprep.subr.bf16.mxu0 0
    %840 = vmatpush1.bf16.msra.mxu0 0
    %841 = vmatprep.subr.bf16.mxu0 0
    %842 = vmatpush1.bf16.msra.mxu0 0
    %843 = vmatprep.mubr.bf16.mxu0 0
    %844 = vmatmul.mubr.bf16.gmra.mrb[0].mxu0 %v809
    %v845 = vpop.f32.mrb[0].mxu0
    %v846 = vadd.f32 0.0, %v845
    %v847 = vpop.f32.mrb[0].mxu0
    %v848 = vpop.f32.mrb[0].mxu0
    %v849 = vadd.f32 0.0, %v848
    %v850 = vpop.f32.mrb[0].mxu0
    %851 = vdwg.mxu0
    %v853 = vsel %vm711, %v802, 0
    %855 = vmatprep.subr.bf16.mxu0 0
    %856 = vmatpush1.bf16.msra.mxu0 %v707
    %857 = vmatprep.subr.bf16.mxu0 0
    %858 = vmatpush1.bf16.msra.mxu0 %v708
    %859 = vmatprep.subr.bf16.mxu0 0
    %860 = vmatpush1.bf16.msra.mxu0 0
    %861 = vmatprep.subr.bf16.mxu0 0
    %862 = vmatpush1.bf16.msra.mxu0 0
    %863 = vmatprep.subr.bf16.mxu0 0
    %864 = vmatpush1.bf16.msra.mxu0 0
    %865 = vmatprep.subr.bf16.mxu0 0
    %866 = vmatpush1.bf16.msra.mxu0 0
    %867 = vmatprep.subr.bf16.mxu0 0
    %868 = vmatpush1.bf16.msra.mxu0 0
    %869 = vmatprep.subr.bf16.mxu0 0
    %870 = vmatpush1.bf16.msra.mxu0 0
    %871 = vmatprep.subr.bf16.mxu0 0
    %872 = vmatpush1.bf16.msra.mxu0 0
    %873 = vmatprep.subr.bf16.mxu0 0
    %874 = vmatpush1.bf16.msra.mxu0 0
    %875 = vmatprep.subr.bf16.mxu0 0
    %876 = vmatpush1.bf16.msra.mxu0 0
    %877 = vmatprep.subr.bf16.mxu0 0
    %878 = vmatpush1.bf16.msra.mxu0 0
    %879 = vmatprep.subr.bf16.mxu0 0
    %880 = vmatpush1.bf16.msra.mxu0 0
    %881 = vmatprep.subr.bf16.mxu0 0
    %882 = vmatpush1.bf16.msra.mxu0 0
    %883 = vmatprep.subr.bf16.mxu0 0
    %884 = vmatpush1.bf16.msra.mxu0 0
    %885 = vmatprep.subr.bf16.mxu0 0
    %886 = vmatpush1.bf16.msra.mxu0 0
    %887 = vmatprep.mubr.bf16.mxu0 0
    %888 = vmatmul.mubr.bf16.gmra.mrb[0].mxu0 %v853
    %v889 = vpop.f32.mrb[0].mxu0
    %v890 = vadd.f32 %v846, %v889
    %v891 = vpop.f32.mrb[0].mxu0
    %v892 = vpop.f32.mrb[0].mxu0
    %v893 = vadd.f32 %v849, %v892
    %v894 = vpop.f32.mrb[0].mxu0
    %895 = vdwg.mxu0
    %v896 = vmul.f32 %v800, %v890
    %v897 = vmul.f32 %v801, %v893
    %v898 = vld [vmem:[%s5] sm:$0x1]
    %v900 = vlaneseq
    %v901 = vshrl.u32 %v900, 7
    %v902 = vsub.s32 0, %v901
    %v903 = vrot.slane %v898, %v902
    %v905 = vmul.f32 %v896, %v903
    %v906 = vmul.f32 %v897, %v903
    %v907 = vld [vmem:[%s6] sm:$0x1]
    %v909 = vlaneseq
    %v910 = vshrl.u32 %v909, 7
    %v911 = vsub.s32 0, %v910
    %v912 = vrot.slane %v907, %v911
    %v914 = vadd.f32 %v905, %v912
    %v915 = vadd.f32 %v906, %v912
    %v916 = vmax.f32 %v914, 0.0
    %v917 = vmax.f32 %v915, 0.0
    %v918 = vpack.c.bf16 %v917, %v916
    %919 = vst [vmem:[#allocation2 + $0x8] sm:$0xff] %v918
    %v920 = vld [vmem:[#allocation2] sm:$0x80]
    %v921 = vld [vmem:[#allocation2 + $0x8] sm:$0xff]
    %v922 = vld [vmem:[#allocation6] sm:$0xff]
    %v923 = vld [vmem:[#allocation6 + $0x8] sm:$0xff]
    %v924 = vld [vmem:[#allocation6 + $0x10] sm:$0xff]
    %v925 = vld [vmem:[#allocation6 + $0x18] sm:$0xff]
    %v926 = vld [vmem:[#allocation6 + $0x20] sm:$0xff]
    %v927 = vld [vmem:[#allocation6 + $0x28] sm:$0xff]
    %v928 = vld [vmem:[#allocation6 + $0x30] sm:$0xff]
    %v929 = vld [vmem:[#allocation6 + $0x38] sm:$0xff]
    %v930 = vld [vmem:[#allocation6 + $0x40] sm:$0xff]
    %v931 = vld [vmem:[#allocation6 + $0x48] sm:$0xff]
    %v932 = vld [vmem:[#allocation6 + $0x50] sm:$0xff]
    %v933 = vld [vmem:[#allocation6 + $0x58] sm:$0xff]
    %v934 = vld [vmem:[#allocation6 + $0x60] sm:$0xff]
    %v935 = vld [vmem:[#allocation6 + $0x68] sm:$0xff]
    %v936 = vld [vmem:[#allocation6 + $0x70] sm:$0xff]
    %v937 = vld [vmem:[#allocation6 + $0x78] sm:$0xff]
    %s938 = scalar_lea.vmem [#allocation6], 128
    %v939 = vld [vmem:[%s938] sm:$0xff]
    %v940 = vld [vmem:[%s938 + $0x8] sm:$0xff]
    %v941 = vld [vmem:[%s938 + $0x10] sm:$0xff]
    %v942 = vld [vmem:[%s938 + $0x18] sm:$0xff]
    %v943 = vld [vmem:[%s938 + $0x20] sm:$0xff]
    %v944 = vld [vmem:[%s938 + $0x28] sm:$0xff]
    %v945 = vld [vmem:[%s938 + $0x30] sm:$0xff]
    %v946 = vld [vmem:[%s938 + $0x38] sm:$0xff]
    %v947 = vld [vmem:[%s938 + $0x40] sm:$0xff]
    %v948 = vld [vmem:[%s938 + $0x48] sm:$0xff]
    %v949 = vld [vmem:[%s938 + $0x50] sm:$0xff]
    %v950 = vld [vmem:[%s938 + $0x58] sm:$0xff]
    %v951 = vld [vmem:[%s938 + $0x60] sm:$0xff]
    %v952 = vld [vmem:[%s938 + $0x68] sm:$0xff]
    %v953 = vld [vmem:[%s938 + $0x70] sm:$0xff]
    %v954 = vld [vmem:[%s938 + $0x78] sm:$0xff]
    %v971 = vunpack.c.l.b16 %v939
    %v972 = vunpack.c.h.b16 %v939
    %v973 = vunpack.c.l.b16 %v940
    %v974 = vunpack.c.h.b16 %v940
    %v975 = vunpack.c.l.b16 %v941
    %v976 = vunpack.c.h.b16 %v941
    %v977 = vunpack.c.l.b16 %v942
    %v978 = vunpack.c.h.b16 %v942
    %v979 = vunpack.c.l.b16 %v943
    %v980 = vunpack.c.h.b16 %v943
    %v981 = vunpack.c.l.b16 %v944
    %v982 = vunpack.c.h.b16 %v944
    %v983 = vunpack.c.l.b16 %v945
    %v984 = vunpack.c.h.b16 %v945
    %v985 = vunpack.c.l.b16 %v946
    %v986 = vunpack.c.h.b16 %v946
    %v987 = vunpack.c.l.b16 %v947
    %v988 = vunpack.c.h.b16 %v947
    %v989 = vunpack.c.l.b16 %v948
    %v990 = vunpack.c.h.b16 %v948
    %v991 = vunpack.c.l.b16 %v949
    %v992 = vunpack.c.h.b16 %v949
    %v993 = vunpack.c.l.b16 %v950
    %v994 = vunpack.c.h.b16 %v950
    %v995 = vunpack.c.l.b16 %v951
    %v996 = vunpack.c.h.b16 %v951
    %v997 = vunpack.c.l.b16 %v952
    %v998 = vunpack.c.h.b16 %v952
    %v999 = vunpack.c.l.b16 %v953
    %v1000 = vunpack.c.h.b16 %v953
    %v1001 = vunpack.c.l.b16 %v954
    %v1002 = vunpack.c.h.b16 %v954
    %v1003 = vpack.c.b16 %v973, %v971
    %v1004 = vpack.c.b16 %v974, %v972
    %v1005 = vpack.c.b16 %v977, %v975
    %v1006 = vpack.c.b16 %v978, %v976
    %v1007 = vpack.c.b16 %v981, %v979
    %v1008 = vpack.c.b16 %v982, %v980
    %v1009 = vpack.c.b16 %v985, %v983
    %v1010 = vpack.c.b16 %v986, %v984
    %v1011 = vpack.c.b16 %v989, %v987
    %v1012 = vpack.c.b16 %v990, %v988
    %v1013 = vpack.c.b16 %v993, %v991
    %v1014 = vpack.c.b16 %v994, %v992
    %v1015 = vpack.c.b16 %v997, %v995
    %v1016 = vpack.c.b16 %v998, %v996
    %v1017 = vpack.c.b16 %v1001, %v999
    %v1018 = vpack.c.b16 %v1002, %v1000
    %1035 = vmatprep.subr.bf16.mxu0 %v1004
    %1036 = vmatpush1.bf16.msra.mxu0 %v1003
    %1037 = vmatprep.subr.bf16.mxu0 %v1006
    %1038 = vmatpush1.bf16.msra.mxu0 %v1005
    %1039 = vmatprep.subr.bf16.mxu0 %v1008
    %1040 = vmatpush1.bf16.msra.mxu0 %v1007
    %1041 = vmatprep.subr.bf16.mxu0 %v1010
    %1042 = vmatpush1.bf16.msra.mxu0 %v1009
    %1043 = vmatprep.subr.bf16.mxu0 %v1012
    %1044 = vmatpush1.bf16.msra.mxu0 %v1011
    %1045 = vmatprep.subr.bf16.mxu0 %v1014
    %1046 = vmatpush1.bf16.msra.mxu0 %v1013
    %1047 = vmatprep.subr.bf16.mxu0 %v1016
    %1048 = vmatpush1.bf16.msra.mxu0 %v1015
    %1049 = vmatprep.subr.bf16.mxu0 %v1018
    %1050 = vmatpush1.bf16.msra.mxu0 %v1017
    %1051 = vmatprep.subr.bf16.mxu0 0
    %1052 = vmatpush1.bf16.msra.mxu0 0
    %1053 = vmatprep.subr.bf16.mxu0 0
    %1054 = vmatpush1.bf16.msra.mxu0 0
    %1055 = vmatprep.subr.bf16.mxu0 0
    %1056 = vmatpush1.bf16.msra.mxu0 0
    %1057 = vmatprep.subr.bf16.mxu0 0
    %1058 = vmatpush1.bf16.msra.mxu0 0
    %1059 = vmatprep.subr.bf16.mxu0 0
    %1060 = vmatpush1.bf16.msra.mxu0 0
    %1061 = vmatprep.subr.bf16.mxu0 0
    %1062 = vmatpush1.bf16.msra.mxu0 0
    %1063 = vmatprep.subr.bf16.mxu0 0
    %1064 = vmatpush1.bf16.msra.mxu0 0
    %1065 = vmatprep.subr.bf16.mxu0 0
    %1066 = vmatpush1.bf16.msra.mxu0 0
    %1067 = vmatprep.mubr.bf16.mxu0 0
    %1068 = vmatmul.mubr.bf16.gmra.mrb[0].mxu0 %v921
    %v1069 = vpop.f32.mrb[0].mxu0
    %v1070 = vadd.f32 0.0, %v1069
    %v1071 = vpop.f32.mrb[0].mxu0
    %v1072 = vadd.f32 0.0, %v1071
    %v1073 = vpop.f32.mrb[0].mxu0
    %v1074 = vadd.f32 0.0, %v1073
    %v1075 = vpop.f32.mrb[0].mxu0
    %v1076 = vadd.f32 0.0, %v1075
    %1077 = vdwg.mxu0
    %v1079 = vshrl.u32 %v920, 16
    %v1081 = vrot.slane %v1079, 7
    %v1083 = vshrl.u32 %v921, 16
    %v1085 = vrot.slane %v1083, 7
    %v1086 = vshll.u32 %v921, 16
    %v1088 = vor.u32 %v1085, %v1086
    %v1089 = vsel %vm197, %v1081, %v1088
    %v1107 = vunpack.c.l.b16 %v922
    %v1108 = vunpack.c.h.b16 %v922
    %v1109 = vunpack.c.l.b16 %v923
    %v1110 = vunpack.c.h.b16 %v923
    %v1111 = vunpack.c.l.b16 %v924
    %v1112 = vunpack.c.h.b16 %v924
    %v1113 = vunpack.c.l.b16 %v925
    %v1114 = vunpack.c.h.b16 %v925
    %v1115 = vunpack.c.l.b16 %v926
    %v1116 = vunpack.c.h.b16 %v926
    %v1117 = vunpack.c.l.b16 %v927
    %v1118 = vunpack.c.h.b16 %v927
    %v1119 = vunpack.c.l.b16 %v928
    %v1120 = vunpack.c.h.b16 %v928
    %v1121 = vunpack.c.l.b16 %v929
    %v1122 = vunpack.c.h.b16 %v929
    %v1123 = vunpack.c.l.b16 %v930
    %v1124 = vunpack.c.h.b16 %v930
    %v1125 = vunpack.c.l.b16 %v931
    %v1126 = vunpack.c.h.b16 %v931
    %v1127 = vunpack.c.l.b16 %v932
    %v1128 = vunpack.c.h.b16 %v932
    %v1129 = vunpack.c.l.b16 %v933
    %v1130 = vunpack.c.h.b16 %v933
    %v1131 = vunpack.c.l.b16 %v934
    %v1132 = vunpack.c.h.b16 %v934
    %v1133 = vunpack.c.l.b16 %v935
    %v1134 = vunpack.c.h.b16 %v935
    %v1135 = vunpack.c.l.b16 %v936
    %v1136 = vunpack.c.h.b16 %v936
    %v1137 = vunpack.c.l.b16 %v937
    %v1138 = vunpack.c.h.b16 %v937
    %v1139 = vpack.c.b16 %v1109, %v1107
    %v1140 = vpack.c.b16 %v1110, %v1108
    %v1141 = vpack.c.b16 %v1113, %v1111
    %v1142 = vpack.c.b16 %v1114, %v1112
    %v1143 = vpack.c.b16 %v1117, %v1115
    %v1144 = vpack.c.b16 %v1118, %v1116
    %v1145 = vpack.c.b16 %v1121, %v1119
    %v1146 = vpack.c.b16 %v1122, %v1120
    %v1147 = vpack.c.b16 %v1125, %v1123
    %v1148 = vpack.c.b16 %v1126, %v1124
    %v1149 = vpack.c.b16 %v1129, %v1127
    %v1150 = vpack.c.b16 %v1130, %v1128
    %v1151 = vpack.c.b16 %v1133, %v1131
    %v1152 = vpack.c.b16 %v1134, %v1132
    %v1153 = vpack.c.b16 %v1137, %v1135
    %v1154 = vpack.c.b16 %v1138, %v1136
    %1171 = vmatprep.subr.bf16.mxu0 %v1140
    %1172 = vmatpush1.bf16.msra.mxu0 %v1139
    %1173 = vmatprep.subr.bf16.mxu0 %v1142
    %1174 = vmatpush1.bf16.msra.mxu0 %v1141
    %1175 = vmatprep.subr.bf16.mxu0 %v1144
    %1176 = vmatpush1.bf16.msra.mxu0 %v1143
    %1177 = vmatprep.subr.bf16.mxu0 %v1146
    %1178 = vmatpush1.bf16.msra.mxu0 %v1145
    %1179 = vmatprep.subr.bf16.mxu0 %v1148
    %1180 = vmatpush1.bf16.msra.mxu0 %v1147
    %1181 = vmatprep.subr.bf16.mxu0 %v1150
    %1182 = vmatpush1.bf16.msra.mxu0 %v1149
    %1183 = vmatprep.subr.bf16.mxu0 %v1152
    %1184 = vmatpush1.bf16.msra.mxu0 %v1151
    %1185 = vmatprep.subr.bf16.mxu0 %v1154
    %1186 = vmatpush1.bf16.msra.mxu0 %v1153
    %1187 = vmatprep.subr.bf16.mxu0 0
    %1188 = vmatpush1.bf16.msra.mxu0 0
    %1189 = vmatprep.subr.bf16.mxu0 0
    %1190 = vmatpush1.bf16.msra.mxu0 0
    %1191 = vmatprep.subr.bf16.mxu0 0
    %1192 = vmatpush1.bf16.msra.mxu0 0
    %1193 = vmatprep.subr.bf16.mxu0 0
    %1194 = vmatpush1.bf16.msra.mxu0 0
    %1195 = vmatprep.subr.bf16.mxu0 0
    %1196 = vmatpush1.bf16.msra.mxu0 0
    %1197 = vmatprep.subr.bf16.mxu0 0
    %1198 = vmatpush1.bf16.msra.mxu0 0
    %1199 = vmatprep.subr.bf16.mxu0 0
    %1200 = vmatpush1.bf16.msra.mxu0 0
    %1201 = vmatprep.subr.bf16.mxu0 0
    %1202 = vmatpush1.bf16.msra.mxu0 0
    %1203 = vmatprep.mubr.bf16.mxu0 0
    %1204 = vmatmul.mubr.bf16.gmra.mrb[0].mxu0 %v1089
    %v1205 = vpop.f32.mrb[0].mxu0
    %v1206 = vadd.f32 %v1070, %v1205
    %v1207 = vpop.f32.mrb[0].mxu0
    %v1208 = vadd.f32 %v1072, %v1207
    %v1209 = vpop.f32.mrb[0].mxu0
    %v1210 = vadd.f32 %v1074, %v1209
    %v1211 = vpop.f32.mrb[0].mxu0
    %v1212 = vadd.f32 %v1076, %v1211
    %1213 = vdwg.mxu0
    %v1214 = vld [vmem:[#allocation2 + $0x8] sm:$0xff]
    %v1215 = vld [vmem:[#allocation2 + $0x10] sm:$0x1]
    %s1216 = scalar_lea.vmem [#allocation6], 256
    %v1217 = vld [vmem:[%s1216] sm:$0xff]
    %v1218 = vld [vmem:[%s1216 + $0x8] sm:$0xff]
    %v1219 = vld [vmem:[%s1216 + $0x10] sm:$0xff]
    %v1220 = vld [vmem:[%s1216 + $0x18] sm:$0xff]
    %v1221 = vld [vmem:[%s1216 + $0x20] sm:$0xff]
    %v1222 = vld [vmem:[%s1216 + $0x28] sm:$0xff]
    %v1223 = vld [vmem:[%s1216 + $0x30] sm:$0xff]
    %v1224 = vld [vmem:[%s1216 + $0x38] sm:$0xff]
    %v1225 = vld [vmem:[%s1216 + $0x40] sm:$0xff]
    %v1226 = vld [vmem:[%s1216 + $0x48] sm:$0xff]
    %v1227 = vld [vmem:[%s1216 + $0x50] sm:$0xff]
    %v1228 = vld [vmem:[%s1216 + $0x58] sm:$0xff]
    %v1229 = vld [vmem:[%s1216 + $0x60] sm:$0xff]
    %v1230 = vld [vmem:[%s1216 + $0x68] sm:$0xff]
    %v1231 = vld [vmem:[%s1216 + $0x70] sm:$0xff]
    %v1232 = vld [vmem:[%s1216 + $0x78] sm:$0xff]
    %v1234 = vshrl.u32 %v1214, 16
    %v1236 = vshll.u32 %v1214, 16
    %v1238 = vrot.slane %v1236, 1
    %v1239 = vor.u32 %v1234, %v1238
    %v1241 = vshll.u32 %v1215, 16
    %v1243 = vrot.slane %v1241, 1
    %v1244 = vsel %vm319, %v1239, %v1243
    %v1262 = vunpack.c.l.b16 %v1217
    %v1263 = vunpack.c.h.b16 %v1217
    %v1264 = vunpack.c.l.b16 %v1218
    %v1265 = vunpack.c.h.b16 %v1218
    %v1266 = vunpack.c.l.b16 %v1219
    %v1267 = vunpack.c.h.b16 %v1219
    %v1268 = vunpack.c.l.b16 %v1220
    %v1269 = vunpack.c.h.b16 %v1220
    %v1270 = vunpack.c.l.b16 %v1221
    %v1271 = vunpack.c.h.b16 %v1221
    %v1272 = vunpack.c.l.b16 %v1222
    %v1273 = vunpack.c.h.b16 %v1222
    %v1274 = vunpack.c.l.b16 %v1223
    %v1275 = vunpack.c.h.b16 %v1223
    %v1276 = vunpack.c.l.b16 %v1224
    %v1277 = vunpack.c.h.b16 %v1224
    %v1278 = vunpack.c.l.b16 %v1225
    %v1279 = vunpack.c.h.b16 %v1225
    %v1280 = vunpack.c.l.b16 %v1226
    %v1281 = vunpack.c.h.b16 %v1226
    %v1282 = vunpack.c.l.b16 %v1227
    %v1283 = vunpack.c.h.b16 %v1227
    %v1284 = vunpack.c.l.b16 %v1228
    %v1285 = vunpack.c.h.b16 %v1228
    %v1286 = vunpack.c.l.b16 %v1229
    %v1287 = vunpack.c.h.b16 %v1229
    %v1288 = vunpack.c.l.b16 %v1230
    %v1289 = vunpack.c.h.b16 %v1230
    %v1290 = vunpack.c.l.b16 %v1231
    %v1291 = vunpack.c.h.b16 %v1231
    %v1292 = vunpack.c.l.b16 %v1232
    %v1293 = vunpack.c.h.b16 %v1232
    %v1294 = vpack.c.b16 %v1264, %v1262
    %v1295 = vpack.c.b16 %v1265, %v1263
    %v1296 = vpack.c.b16 %v1268, %v1266
    %v1297 = vpack.c.b16 %v1269, %v1267
    %v1298 = vpack.c.b16 %v1272, %v1270
    %v1299 = vpack.c.b16 %v1273, %v1271
    %v1300 = vpack.c.b16 %v1276, %v1274
    %v1301 = vpack.c.b16 %v1277, %v1275
    %v1302 = vpack.c.b16 %v1280, %v1278
    %v1303 = vpack.c.b16 %v1281, %v1279
    %v1304 = vpack.c.b16 %v1284, %v1282
    %v1305 = vpack.c.b16 %v1285, %v1283
    %v1306 = vpack.c.b16 %v1288, %v1286
    %v1307 = vpack.c.b16 %v1289, %v1287
    %v1308 = vpack.c.b16 %v1292, %v1290
    %v1309 = vpack.c.b16 %v1293, %v1291
    %1326 = vmatprep.subr.bf16.mxu0 %v1295
    %1327 = vmatpush1.bf16.msra.mxu0 %v1294
    %1328 = vmatprep.subr.bf16.mxu0 %v1297
    %1329 = vmatpush1.bf16.msra.mxu0 %v1296
    %1330 = vmatprep.subr.bf16.mxu0 %v1299
    %1331 = vmatpush1.bf16.msra.mxu0 %v1298
    %1332 = vmatprep.subr.bf16.mxu0 %v1301
    %1333 = vmatpush1.bf16.msra.mxu0 %v1300
    %1334 = vmatprep.subr.bf16.mxu0 %v1303
    %1335 = vmatpush1.bf16.msra.mxu0 %v1302
    %1336 = vmatprep.subr.bf16.mxu0 %v1305
    %1337 = vmatpush1.bf16.msra.mxu0 %v1304
    %1338 = vmatprep.subr.bf16.mxu0 %v1307
    %1339 = vmatpush1.bf16.msra.mxu0 %v1306
    %1340 = vmatprep.subr.bf16.mxu0 %v1309
    %1341 = vmatpush1.bf16.msra.mxu0 %v1308
    %1342 = vmatprep.subr.bf16.mxu0 0
    %1343 = vmatpush1.bf16.msra.mxu0 0
    %1344 = vmatprep.subr.bf16.mxu0 0
    %1345 = vmatpush1.bf16.msra.mxu0 0
    %1346 = vmatprep.subr.bf16.mxu0 0
    %1347 = vmatpush1.bf16.msra.mxu0 0
    %1348 = vmatprep.subr.bf16.mxu0 0
    %1349 = vmatpush1.bf16.msra.mxu0 0
    %1350 = vmatprep.subr.bf16.mxu0 0
    %1351 = vmatpush1.bf16.msra.mxu0 0
    %1352 = vmatprep.subr.bf16.mxu0 0
    %1353 = vmatpush1.bf16.msra.mxu0 0
    %1354 = vmatprep.subr.bf16.mxu0 0
    %1355 = vmatpush1.bf16.msra.mxu0 0
    %1356 = vmatprep.subr.bf16.mxu0 0
    %1357 = vmatpush1.bf16.msra.mxu0 0
    %1358 = vmatprep.mubr.bf16.mxu0 0
    %1359 = vmatmul.mubr.bf16.gmra.mrb[0].mxu0 %v1244
    %v1360 = vpop.f32.mrb[0].mxu0
    %v1361 = vadd.f32 0.0, %v1360
    %v1362 = vpop.f32.mrb[0].mxu0
    %v1363 = vadd.f32 0.0, %v1362
    %v1364 = vpop.f32.mrb[0].mxu0
    %v1365 = vadd.f32 0.0, %v1364
    %v1366 = vpop.f32.mrb[0].mxu0
    %v1367 = vadd.f32 0.0, %v1366
    %1368 = vdwg.mxu0
    %v1369 = vadd.f32 %v1206, %v1361
    %v1370 = vadd.f32 %v1208, %v1363
    %v1371 = vadd.f32 %v1210, %v1365
    %v1372 = vadd.f32 %v1212, %v1367
    %v1373 = vld [vmem:[%s8] sm:$0x3]
    %v1375 = vlaneseq
    %v1376 = vshrl.u32 %v1375, 7
    %v1377 = vsub.s32 0, %v1376
    %v1378 = vrot.slane %v1373, %v1377
    %v1379 = vlaneseq
    %v1380 = vshrl.u32 %v1379, 7
    %v1381 = vsub.s32 1, %v1380
    %v1382 = vrot.slane %v1373, %v1381
    %v1385 = vadd.f32 %v1369, %v1378
    %v1386 = vadd.f32 %v1370, %v1382
    %v1387 = vadd.f32 %v1371, %v1378
    %v1388 = vadd.f32 %v1372, %v1382
    %1389 = vst [vmem:[#allocation8] sm:$0xff] %v1385
    %1390 = vst [vmem:[#allocation8 + $0x8] sm:$0xff] %v1386
    %1391 = vst [vmem:[#allocation8 + $0x10] sm:$0xff] %v1387
    %1392 = vst [vmem:[#allocation8 + $0x18] sm:$0xff] %v1388
    // Predicated region
    $region46: #{tpu_custom_call.1} parent=1 // pred_check
      _
    $region47: #{tpu_custom_call.1} parent=1 // pred_check_branch
      %1394 = sbr.rel (0) target = $region49
    $region48: #{tpu_custom_call.1} parent=1 // pred_region
      %s1396 = ssub.s32 512, 512
      %1397 = vsyncadd [#allocation5], %s1396
      %s1398 = sshll.u32 [#allocation8], 4
      %s1399 = int_to_ptr.vmem [resolvable:$true] %s1398
      %1404 = dma.vmem_to_hbm [thread:$0]  %s1399, 512, %s9, [#allocation5], 256, 256, 16
    $region49: #{tpu_custom_call.1} parent=1 // pred_fallthru
      _
    // Predicated region
    $region50: #{tpu_custom_call.1} parent=1 // pred_check
      _
    $region51: #{tpu_custom_call.1} parent=1 // pred_check_branch
      %1406 = sbr.rel (0) target = $region53
    $region52: #{tpu_custom_call.1} parent=1 // pred_region
      %1407 = dma.done [#allocation5], 512
    $region53: #{tpu_custom_call.1} parent=1 // pred_fallthru
      _
    %1408 = vsyncpa [#allocation4], 1
    %1409 = vsyncpa [#allocation7], 1
    %1410 = vsyncpa [#allocation5], 1

</llo_original>
